<compile_context>
chip_gen: v7x
topology: tpu7x:2x2x1
jax: 0.10.0
libtpu: 0.0.40
codegen_flags: <defaults>
</compile_context>

<pallas_src>
import functools

import jax
import jax.numpy as jnp
from jax import lax
from jax.experimental import pallas as pl
from jax.experimental.pallas import tpu as pltpu


def _contrastive_lse_kernel(x_ref, y_ref, bias_ref, out_ref, m_scr, l_scr, *,
                            mask_cols):
    """One (row-tile i, col-tile j) grid step: MXU matmul + online logsumexp."""
    j = pl.program_id(1)

    @pl.when(j == 0)
    def _init():
        m_scr[...] = jnp.full_like(m_scr, -jnp.inf)
        l_scr[...] = jnp.zeros_like(l_scr)

    # Transpose-free NT matmul: contract the lane (D) axis of both operands.
    # Operands arrive already normalized (and x pre-scaled by 1/tau) in the
    # dtype the wrapper chose for the MXU feed; accumulate in f32.
    s = lax.dot_general(x_ref[...], y_ref[...],
                        dimension_numbers=(((1,), (1,)), ((), ())),
                        preferred_element_type=jnp.float32)        # (TM, TN)

    if mask_cols:
        # Additive column bias: 0 for valid columns, -1e30 (finite!) for
        # padded columns.  Only emitted when B is not TN-aligned.
        s = s + bias_ref[...]

    # Online logsumexp across column tiles.
    m_prev = m_scr[...]
    m_new = jnp.maximum(m_prev, jnp.max(s, axis=-1, keepdims=True))
    l_scr[...] = (jnp.exp(m_prev - m_new) * l_scr[...]
                  + jnp.sum(jnp.exp(s - m_new), axis=-1, keepdims=True))
    m_scr[...] = m_new

    @pl.when(j == pl.num_programs(1) - 1)
    def _finalize():
        # Per-row logsumexp.  (TM, 1) output is a masked store, but it is
        # written only once per row tile — left as-is per the review, and it
        # keeps per-row values available for a future backward pass.
        out_ref[...] = m_scr[...] + jnp.log(l_scr[...])


def _round_up(n, m):
    return ((n + m - 1) // m) * m


def contrastive_loss(x, y, tau, *, tile_m=512, tile_n=256, use_bf16_matmul=None):
    """x: (B, D), y: (B, D) -> scalar float32 loss (matches the PyTorch module).

    `tile_m`/`tile_n` are the row/column tiles of the B x B logits.  If
    `use_bf16_matmul` is None the MXU operands keep the input dtype (bf16
    inputs -> bf16 feed); setting it True for f32 inputs trades a little
    accuracy for a much faster MXU path on v5e.
    """
    B, D = x.shape
    assert y.shape == (B, D)

    # ---- Wrapper prepass (tiny O(B*D)): normalize, fold 1/tau, diagonal. ----
    inv_tau = jnp.float32(1.0 / float(tau))
    eps2 = jnp.float32(1e-24)  # F.normalize: v / max(||v||, 1e-12)
    xf = x.astype(jnp.float32)
    yf = y.astype(jnp.float32)
    xn = xf * lax.rsqrt(jnp.maximum(jnp.sum(xf * xf, -1, keepdims=True), eps2))
    yn = yf * lax.rsqrt(jnp.maximum(jnp.sum(yf * yf, -1, keepdims=True), eps2))
    xn = xn * inv_tau                                   # fold 1/tau into rows

    # Diagonal logits (labels = arange(B)) directly from the normalized pair.
    diag = jnp.sum(xn * yn, axis=-1)                    # (B,), f32

    if use_bf16_matmul is None:
        use_bf16_matmul = (x.dtype == jnp.bfloat16 or y.dtype == jnp.bfloat16)
    op_dtype = jnp.bfloat16 if use_bf16_matmul else jnp.float32
    xn = xn.astype(op_dtype)
    yn = yn.astype(op_dtype)

    # ---- Tile selection. ----
    d_pad = max(128, _round_up(D, 128))                 # full lane occupancy
    itemsize = jnp.dtype(op_dtype).itemsize

    tm = min(tile_m, _round_up(B, 8))                   # row tile (mult of 8)
    tn = min(tile_n, _round_up(B, 128))                 # col tile (mult of 128)

    # Keep >= 2 row tiles for large B so both v7x TensorCores get work
    # ("parallel" row axis).
    if B >= 256 and pl.cdiv(B, tm) < 2:
        tm = max(128, _round_up(pl.cdiv(B, 2), 8))

    # Auto-shrink tiles so double-buffered input blocks fit well inside the
    # v7x 64 MiB/TC VMEM (48 MiB working budget leaves headroom).
    budget = 48 << 20

    def _est(tm_, tn_):
        return 2 * (tm_ + tn_) * d_pad * itemsize

    while _est(tm, tn) > budget and tm > 128:
        tm = max(128, _round_up(tm // 2, 8))
    while _est(tm, tn) > budget and tn > 128:
        tn = max(128, _round_up(tn // 2, 128))

    # ---- Pad operands (rows of x to TM multiple, rows of y to TN multiple,
    #      D to d_pad).  Zero rows/cols are neutral for the dot product. ----
    b_rows = _round_up(B, tm)
    b_cols = _round_up(B, tn)
    xp = jnp.pad(xn, ((0, b_rows - B), (0, d_pad - D)))
    yp = jnp.pad(yn, ((0, b_cols - B), (0, d_pad - D)))

    mask_cols = (b_cols != B)
    col_bias = jnp.where(jnp.arange(b_cols) < B,
                         jnp.float32(0.0), jnp.float32(-1e30)).reshape(1, b_cols)

    # ---- VMEM budget for this configuration. ----
    live_bytes = _est(tm, tn) + 2 * (tm + tn) * 4 + 2 * tm * 4
    vmem_limit = int(min(64 << 20, max(live_bytes + (4 << 20), 32 << 20)))

    grid = (b_rows // tm, b_cols // tn)   # (row tiles "parallel", col reduction)
    kernel = functools.partial(_contrastive_lse_kernel, mask_cols=mask_cols)

    lse = pl.pallas_call(
        kernel,
        out_shape=jax.ShapeDtypeStruct((b_rows, 1), jnp.float32),
        grid_spec=pltpu.PrefetchScalarGridSpec(
            num_scalar_prefetch=0,
            grid=grid,
            in_specs=[
                pl.BlockSpec((tm, d_pad), lambda i, j: (i, 0)),   # x row tile
                pl.BlockSpec((tn, d_pad), lambda i, j: (j, 0)),   # y col tile
                pl.BlockSpec((1, tn), lambda i, j: (0, j)),       # column bias
            ],
            out_specs=pl.BlockSpec((tm, 1), lambda i, j: (i, 0)),
            scratch_shapes=[
                pltpu.VMEM((tm, 1), jnp.float32),   # running max m
                pltpu.VMEM((tm, 1), jnp.float32),   # running sum l
            ],
        ),
        compiler_params=pltpu.CompilerParams(
            dimension_semantics=("parallel", "arbitrary"),
            vmem_limit_bytes=vmem_limit,
        ),
    )(xp, yp, col_bias)

    # loss = mean_r ( logsumexp(logits[r, :]) - logits[r, r] )
    return jnp.sum(lse[:B, 0] - diag) / jnp.float32(B)


def contrastive_loss_ref(x, y, tau):
    """Pure-JAX reference (mirrors the PyTorch forward)."""
    eps = 1e-12
    xn = x / jnp.maximum(jnp.linalg.norm(x, axis=-1, keepdims=True), eps)
    yn = y / jnp.maximum(jnp.linalg.norm(y, axis=-1, keepdims=True), eps)
    logits = (xn @ yn.T) / tau
    logp = jax.nn.log_softmax(logits, axis=-1)
    return -jnp.mean(jnp.diag(logp))


if __name__ == "__main__":
    tau = 0.07
    key = jax.random.PRNGKey(0)
    kx, ky = jax.random.split(key)

    # Main case: 2x2 tile grid (TM=256 via the megacore split, TN=256),
    # online logsumexp over 2 column tiles, no padding.
    B, D = 512, 128
    x = jax.random.normal(kx, (B, D), dtype=jnp.float32)
    y = jax.random.normal(ky, (B, D), dtype=jnp.float32)
    loss = contrastive_loss(x, y, tau)
    jax.block_until_ready(loss)
    ref = contrastive_loss_ref(x, y, tau)
    assert jnp.allclose(loss, ref, rtol=1e-4, atol=1e-5), (loss, ref)

    # Ragged tiny case: D padded 32 -> 128, columns padded 20 -> 128 with the
    # additive bias mask, single tile.
    B2, D2 = 20, 32
    x2 = jax.random.normal(kx, (B2, D2), dtype=jnp.float32)
    y2 = jax.random.normal(ky, (B2, D2), dtype=jnp.float32)
    loss2 = contrastive_loss(x2, y2, tau)
    jax.block_until_ready(loss2)
    ref2 = contrastive_loss_ref(x2, y2, tau)
    assert jnp.allclose(loss2, ref2, rtol=1e-4, atol=1e-5), (loss2, ref2)

    # Mixed case: padded rows AND padded columns with a 2x2 grid
    # (B=300 -> TM=152 x 2 row tiles, TN=256 x 2 col tiles, D 96 -> 128).
    B3, D3 = 300, 96
    x3 = jax.random.normal(kx, (B3, D3), dtype=jnp.float32)
    y3 = jax.random.normal(ky, (B3, D3), dtype=jnp.float32)
    loss3 = contrastive_loss(x3, y3, tau)
    jax.block_until_ready(loss3)
    ref3 = contrastive_loss_ref(x3, y3, tau)
    assert jnp.allclose(loss3, ref3, rtol=1e-4, atol=1e-5), (loss3, ref3)

    print("KERNEL_OK")
</pallas_src>

<mosaic_0001>
module attributes {stable_mosaic.version = 11 : i64} {
  func.func @_contrastive_lse_kernel(%arg0: i32, %arg1: i32, %arg2: memref<256x128xf32, #tpu.memory_space<vmem>>, %arg3: memref<256x128xf32, #tpu.memory_space<vmem>>, %arg4: memref<1x256xf32, #tpu.memory_space<vmem>>, %arg5: memref<256x1xf32, #tpu.memory_space<vmem>>, %arg6: memref<256x1xf32, #tpu.memory_space<vmem>>, %arg7: memref<256x1xf32, #tpu.memory_space<vmem>>) attributes {dimension_semantics = [#tpu.dimension_semantics<parallel>, #tpu.dimension_semantics<arbitrary>], iteration_bounds = array<i64: 2, 2>, scalar_prefetch = 0 : i64, scratch_operands = 2 : i64, tpu.core_type = #tpu.core_type<tc>, window_params = [{transform_indices = @transform_0, window_bounds = array<i64: 256, 128>}, {transform_indices = @transform_1, window_bounds = array<i64: 256, 128>}, {transform_indices = @transform_2, window_bounds = array<i64: 1, 256>}, {transform_indices = @transform_3, window_bounds = array<i64: 256, 1>}]} {
    %c0_i32 = arith.constant 0 : i32
    %0 = arith.cmpi eq, %arg1, %c0_i32 : i32
    %1 = arith.extui %0 : i1 to i32
    %c0_i32_0 = arith.constant 0 : i32
    %2 = arith.cmpi ne, %1, %c0_i32_0 : i32
    scf.if %2 {
      %cst_15 = arith.constant 0xFF800000 : f32
      %25 = vector.broadcast %cst_15 : f32 to vector<256x1xf32>
      %c0_16 = arith.constant 0 : index
      %c0_17 = arith.constant 0 : index
      %26 = vector.load %arg6[%c0_16, %c0_17] : memref<256x1xf32, #tpu.memory_space<vmem>>, vector<256x1xf32>
      tpu.vector_store %arg6[%c0_16, %c0_17], %25 {strides = array<i32>} : memref<256x1xf32, #tpu.memory_space<vmem>>, vector<256x1xf32>,
      %cst_18 = arith.constant 0.000000e+00 : f32
      %27 = vector.broadcast %cst_18 : f32 to vector<256x1xf32>
      %c0_19 = arith.constant 0 : index
      %c0_20 = arith.constant 0 : index
      %28 = vector.load %arg7[%c0_19, %c0_20] : memref<256x1xf32, #tpu.memory_space<vmem>>, vector<256x1xf32>
      tpu.vector_store %arg7[%c0_19, %c0_20], %27 {strides = array<i32>} : memref<256x1xf32, #tpu.memory_space<vmem>>, vector<256x1xf32>,
    } else {
    }
    %c0 = arith.constant 0 : index
    %c0_1 = arith.constant 0 : index
    %3 = vector.load %arg2[%c0, %c0_1] : memref<256x128xf32, #tpu.memory_space<vmem>>, vector<256x128xf32>
    %c0_2 = arith.constant 0 : index
    %c0_3 = arith.constant 0 : index
    %4 = vector.load %arg3[%c0_2, %c0_3] : memref<256x128xf32, #tpu.memory_space<vmem>>, vector<256x128xf32>
    %cst = arith.constant dense<0.000000e+00> : vector<256x256xf32>
    %5 = tpu.matmul %3, %4, %cst {dimension_numbers = #tpu.dot_dimension_numbers<[1], [1], [0], [0], [0, 0, 1, 0], [], []>} : vector<256x128xf32>, vector<256x128xf32>, vector<256x256xf32> -> vector<256x256xf32>
    %c0_4 = arith.constant 0 : index
    %c0_5 = arith.constant 0 : index
    %6 = vector.load %arg6[%c0_4, %c0_5] : memref<256x1xf32, #tpu.memory_space<vmem>>, vector<256x1xf32>
    %cst_6 = arith.constant dense<0xFF800000> : vector<256xf32>
    %7 = vector.multi_reduction <maximumf>, %5, %cst_6 [1] : vector<256x256xf32> to vector<256xf32>
    %8 = vector.shape_cast %7 : vector<256xf32> to vector<256x1xf32>
    %9 = arith.maximumf %6, %8 : vector<256x1xf32>
    %10 = arith.subf %6, %9 : vector<256x1xf32>
    %11 = math.exp %10 : vector<256x1xf32>
    %c0_7 = arith.constant 0 : index
    %c0_8 = arith.constant 0 : index
    %12 = vector.load %arg7[%c0_7, %c0_8] : memref<256x1xf32, #tpu.memory_space<vmem>>, vector<256x1xf32>
    %13 = arith.mulf %11, %12 : vector<256x1xf32>
    %14 = vector.broadcast %9 : vector<256x1xf32> to vector<256x256xf32>
    %15 = arith.subf %5, %14 : vector<256x256xf32>
    %16 = math.exp %15 : vector<256x256xf32>
    %cst_9 = arith.constant dense<0.000000e+00> : vector<256xf32>
    %17 = vector.multi_reduction <add>, %16, %cst_9 [1] : vector<256x256xf32> to vector<256xf32>
    %18 = vector.shape_cast %17 : vector<256xf32> to vector<256x1xf32>
    %19 = arith.addf %13, %18 : vector<256x1xf32>
    %c0_10 = arith.constant 0 : index
    %c0_11 = arith.constant 0 : index
    %20 = vector.load %arg7[%c0_10, %c0_11] : memref<256x1xf32, #tpu.memory_space<vmem>>, vector<256x1xf32>
    tpu.vector_store %arg7[%c0_10, %c0_11], %19 {strides = array<i32>} : memref<256x1xf32, #tpu.memory_space<vmem>>, vector<256x1xf32>,
    %c0_12 = arith.constant 0 : index
    %c0_13 = arith.constant 0 : index
    %21 = vector.load %arg6[%c0_12, %c0_13] : memref<256x1xf32, #tpu.memory_space<vmem>>, vector<256x1xf32>
    tpu.vector_store %arg6[%c0_12, %c0_13], %9 {strides = array<i32>} : memref<256x1xf32, #tpu.memory_space<vmem>>, vector<256x1xf32>,
    %c1_i32 = arith.constant 1 : i32
    %22 = arith.cmpi eq, %arg1, %c1_i32 : i32
    %23 = arith.extui %22 : i1 to i32
    %c0_i32_14 = arith.constant 0 : i32
    %24 = arith.cmpi ne, %23, %c0_i32_14 : i32
    scf.if %24 {
      %c0_15 = arith.constant 0 : index
      %c0_16 = arith.constant 0 : index
      %25 = vector.load %arg6[%c0_15, %c0_16] : memref<256x1xf32, #tpu.memory_space<vmem>>, vector<256x1xf32>
      %c0_17 = arith.constant 0 : index
      %c0_18 = arith.constant 0 : index
      %26 = vector.load %arg7[%c0_17, %c0_18] : memref<256x1xf32, #tpu.memory_space<vmem>>, vector<256x1xf32>
      %27 = math.log %26 : vector<256x1xf32>
      %28 = arith.addf %25, %27 : vector<256x1xf32>
      %c0_19 = arith.constant 0 : index
      %c0_20 = arith.constant 0 : index
      %29 = vector.load %arg5[%c0_19, %c0_20] : memref<256x1xf32, #tpu.memory_space<vmem>>, vector<256x1xf32>
      tpu.vector_store %arg5[%c0_19, %c0_20], %28 {strides = array<i32>} : memref<256x1xf32, #tpu.memory_space<vmem>>, vector<256x1xf32>,
    } else {
    }
    return
  }
  func.func @transform_0(%arg0: i32, %arg1: i32) -> (i32, i32) {
    %c0_i32 = arith.constant 0 : i32
    %c0_i32_0 = arith.constant 0 : i32
    return %arg0, %c0_i32 : i32, i32
  }
  func.func @transform_1(%arg0: i32, %arg1: i32) -> (i32, i32) {
    %c0_i32 = arith.constant 0 : i32
    %c0_i32_0 = arith.constant 0 : i32
    return %arg1, %c0_i32 : i32, i32
  }
  func.func @transform_2(%arg0: i32, %arg1: i32) -> (i32, i32) {
    %c0_i32 = arith.constant 0 : i32
    %c0_i32_0 = arith.constant 0 : i32
    return %c0_i32, %arg1 : i32, i32
  }
  func.func @transform_3(%arg0: i32, %arg1: i32) -> (i32, i32) {
    %c0_i32 = arith.constant 0 : i32
    %c0_i32_0 = arith.constant 0 : i32
    return %arg0, %c0_i32 : i32, i32
  }
}

</mosaic_0001>

<llo_original>
// kernel: tpu_custom_call.1
$region0: #{tpu_custom_call.1}
  #allocation0 [shape = 'u32[]', space=smem, size = 0x4, offset = 0x4, fixed_abs, tag = 'smem constant byte address 0x4 - core index']
  #allocation1 [shape = 'u32[144,128]{1,0:T(1,128)}', space=vmem, size = 0x12000, scoped, tag = 'internal scratch']
  #allocation2 [shape = 'f32[256,1]{1,0:T(8,128)}', space=vmem, size = 0x20000, scoped, tag = 'scratch operand']
  #allocation3 [shape = 'f32[256,1]{1,0:T(8,128)}', space=vmem, size = 0x20000, scoped, tag = 'scratch operand']
  %s0 = inlined_call_operand.hbm [shape: f32[512,128], index: 0, kind: input, shape index: {}]
  %s1 = inlined_call_operand.hbm [shape: f32[512,128], index: 1, kind: input, shape index: {}]
  %s2 = inlined_call_operand.vmem [shape: f32[1,512], index: 2, kind: input, shape index: {}]
  %s3 = inlined_call_operand.vmem [shape: f32[512,1], index: 3, kind: output, shape index: {}]
  %s4 = sld [smem:[#allocation0]]
  $region61: #{tpu_custom_call.1} parent=0
    _
  %s6 = ssub.s32 1, %s4
  %s7 = scalar_select 0, %s6, %s4
  $region1: #{tpu_custom_call.1} parent=0
    #allocation4 [shape = 'u8[262144]{0}', space=vmem, size = 0x40000, scoped, tag = 'input window, operand 0']
    #allocation5 [shape = 's32[2]{0}', space=sflag, size = 0x8, scoped, tag = 'scoped memory for tpu_custom_call.1']
    #allocation6 [shape = 'u8[262144]{0}', space=vmem, size = 0x40000, scoped, tag = 'input window, operand 1']
    #allocation7 [shape = 's32[2]{0}', space=sflag, size = 0x8, scoped, tag = 'scoped memory for tpu_custom_call.1']
    %8 = vsyncpa [#allocation5], 0
    %s9 = scalar_lea.sflag [#allocation5], 1
    %10 = vsyncpa %s9, 0
    %11 = vsyncpa [#allocation7], 0
    %s12 = scalar_lea.sflag [#allocation7], 1
    %13 = vsyncpa %s12, 0
    loop: start=0, step=1, limit=6
    $region2: #{tpu_custom_call.1} parent=1 // loop_pre_header
      _
    $region3: #{tpu_custom_call.1} parent=1 // loop_header
      %s15 = sphi 0, %s19
      %p16 = scmp.ge.s32.totalorder %s15, 6
      %s22 = sphi 0, %s34
      %s23 = sphi 0, %s30
      %s24 = sphi 0, %s22
      %s25 = sphi 0, %s23
      %s26 = sphi 0, %s24
      %s27 = sphi 0, %s25
      %s37 = sphi 0, %s39
      %s40 = sphi 0, %s37
      %s41 = sphi 0, %s40
      %s57 = sphi 0, %s41
      %s63 = sphi 0, %s65
      %s66 = sphi 0, %s63
      %s67 = sphi 0, %s66
      %s83 = sphi 0, %s67
      %s89 = sphi 0, %s91
      %s92 = sphi 0, %s89
      %s93 = sphi 0, %s92
      %s109 = sphi 0, %s93
      %s115 = sphi 0, %s117
      %s118 = sphi 0, %s115
      %s119 = sphi 0, %s118
      %s135 = sphi 0, %s119
    $region4: #{tpu_custom_call.1} parent=1 // loop_header_branch
      %18 = sbr.rel (%p16) target = $region8
    $region5: #{tpu_custom_call.1} parent=1 // loop_body
      %s20 = ssub.s32 %s15, 1
      %s21 = ssub.s32 %s15, 2
      %s28 = sadd.s32 1, %s23
      %p29 = scmp.ge.s32.totalorder %s28, 2
      %s30 = scalar_select %p29, 0, %s28
      %s31 = sadd.s32 1, %s22
      %s32 = scalar_select %p29, %s31, %s22
      %p33 = scmp.ge.s32.totalorder %s32, 2
      %s34 = scalar_select %p33, 0, %s32
      %s35 = ssub.s32 %s22, %s34
      %p36 = scmp.eq.s32.totalorder %s35, 0
      %s38 = sadd.s32 %s37, 1
      %s39 = scalar_select %p36, %s37, %s38
      %p42 = pneg %p36
      %p43 = scmp.eq.s32.totalorder %s15, 3
      %p44 = por %p42, %p43
      %p45 = scmp.ne.s32.totalorder %s37, %s40
      %p46 = scmp.eq.s32.totalorder %s15, 0
      %p47 = por %p45, %p46
      %p48 = scmp.ne.s32.totalorder %s37, %s40
      %p49 = scmp.eq.s32.totalorder %s20, 3
      %p50 = por %p48, %p49
      %p51 = scmp.ne.s32.totalorder %s40, %s41
      %p52 = scmp.eq.s32.totalorder %s20, 0
      %p53 = por %p51, %p52
      %p54 = scmp.ne.s32.totalorder %s40, %s41
      %p55 = scmp.eq.s32.totalorder %s21, 3
      %p56 = por %p54, %p55
      %p58 = scmp.ne.s32.totalorder %s41, %s57
      %p59 = scmp.eq.s32.totalorder %s21, 0
      %p60 = por %p58, %p59
      %s61 = ssub.s32 %s23, %s30
      %p62 = scmp.eq.s32.totalorder %s61, 0
      %s64 = sadd.s32 %s63, 1
      %s65 = scalar_select %p62, %s63, %s64
      %p68 = pneg %p62
      %p69 = scmp.eq.s32.totalorder %s15, 3
      %p70 = por %p68, %p69
      %p71 = scmp.ne.s32.totalorder %s63, %s66
      %p72 = scmp.eq.s32.totalorder %s15, 0
      %p73 = por %p71, %p72
      %p74 = scmp.ne.s32.totalorder %s63, %s66
      %p75 = scmp.eq.s32.totalorder %s20, 3
      %p76 = por %p74, %p75
      %p77 = scmp.ne.s32.totalorder %s66, %s67
      %p78 = scmp.eq.s32.totalorder %s20, 0
      %p79 = por %p77, %p78
      %p80 = scmp.ne.s32.totalorder %s66, %s67
      %p81 = scmp.eq.s32.totalorder %s21, 3
      %p82 = por %p80, %p81
      %p84 = scmp.ne.s32.totalorder %s67, %s83
      %p85 = scmp.eq.s32.totalorder %s21, 0
      %p86 = por %p84, %p85
      %s87 = ssub.s32 %s23, %s30
      %p88 = scmp.eq.s32.totalorder %s87, 0
      %s90 = sadd.s32 %s89, 1
      %s91 = scalar_select %p88, %s89, %s90
      %p94 = pneg %p88
      %p95 = scmp.eq.s32.totalorder %s15, 3
      %p96 = por %p94, %p95
      %p97 = scmp.ne.s32.totalorder %s89, %s92
      %p98 = scmp.eq.s32.totalorder %s15, 0
      %p99 = por %p97, %p98
      %p100 = scmp.ne.s32.totalorder %s89, %s92
      %p101 = scmp.eq.s32.totalorder %s20, 3
      %p102 = por %p100, %p101
      %p103 = scmp.ne.s32.totalorder %s92, %s93
      %p104 = scmp.eq.s32.totalorder %s20, 0
      %p105 = por %p103, %p104
      %p106 = scmp.ne.s32.totalorder %s92, %s93
      %p107 = scmp.eq.s32.totalorder %s21, 3
      %p108 = por %p106, %p107
      %p110 = scmp.ne.s32.totalorder %s93, %s109
      %p111 = scmp.eq.s32.totalorder %s21, 0
      %p112 = por %p110, %p111
      %s113 = ssub.s32 %s22, %s34
      %p114 = scmp.eq.s32.totalorder %s113, 0
      %s116 = sadd.s32 %s115, 1
      %s117 = scalar_select %p114, %s115, %s116
      %p120 = pneg %p114
      %p121 = scmp.eq.s32.totalorder %s15, 3
      %p122 = por %p120, %p121
      %p123 = scmp.ne.s32.totalorder %s115, %s118
      %p124 = scmp.eq.s32.totalorder %s15, 0
      %p125 = por %p123, %p124
      %p126 = scmp.ne.s32.totalorder %s115, %s118
      %p127 = scmp.eq.s32.totalorder %s20, 3
      %p128 = por %p126, %p127
      %p129 = scmp.ne.s32.totalorder %s118, %s119
      %p130 = scmp.eq.s32.totalorder %s20, 0
      %p131 = por %p129, %p130
      %p132 = scmp.ne.s32.totalorder %s118, %s119
      %p133 = scmp.eq.s32.totalorder %s21, 3
      %p134 = por %p132, %p133
      %p136 = scmp.ne.s32.totalorder %s119, %s135
      %p137 = scmp.eq.s32.totalorder %s21, 0
      %p138 = por %p136, %p137
      %p139 = scmp.le.s32.totalorder 1, %s15
      %p140 = scmp.lt.s32.totalorder %s15, 5
      %p141 = pnand %p139, %p140
      %p142 = pneg %p141
      // Predicated region
      $region9: #{tpu_custom_call.1} parent=5 // pred_check
        _
      $region10: #{tpu_custom_call.1} parent=5 // pred_check_branch
        %144 = sbr.rel (%p141) target = $region12
      $region11: #{tpu_custom_call.1} parent=5 // pred_region
        %s145 = ssub.s32 %s15, 1
      $region12: #{tpu_custom_call.1} parent=5 // pred_fallthru
        _
      %p146 = scmp.lt.s32.totalorder %s15, 4
      // Predicated region
      $region13: #{tpu_custom_call.1} parent=5 // pred_check
        %p147 = pneg %p146
      $region14: #{tpu_custom_call.1} parent=5 // pred_check_branch
        %149 = sbr.rel (%p147) target = $region16
      $region15: #{tpu_custom_call.1} parent=5 // pred_region
        // Predicated region
        $region17: #{tpu_custom_call.1} parent=15 // pred_check
          %p150 = pneg %p47
        $region18: #{tpu_custom_call.1} parent=15 // pred_check_branch
          %152 = sbr.rel (%p150) target = $region20
        $region19: #{tpu_custom_call.1} parent=15 // pred_region
          %s153 = sand.u32 %s37, 1
          %s154 = scalar_lea.sflag [#allocation5], %s153
          %s155 = sand.u32 %s37, 1
          %s156 = smul.addr %s155, 256
          %s157 = scalar_lea.vmem [#allocation4], %s156
          %s158 = smul.u32 32, %s22
          %s160 = ssub.s32 4096, 4096
          %161 = vsyncadd %s154, %s160
          %s162 = smul.addr %s158, 128
          %s163 = scalar_lea.hbm %s0, %s162
          %s164 = sshll.u32 %s157, 4
          %s165 = int_to_ptr.vmem [resolvable:$true] %s164
          %170 = dma.hbm_to_vmem [thread:$0]  %s163, 4096, %s165, %s154, 128, 128, 8
        $region20: #{tpu_custom_call.1} parent=15 // pred_fallthru
          _
        // Predicated region
        $region21: #{tpu_custom_call.1} parent=15 // pred_check
          %p171 = pneg %p73
        $region22: #{tpu_custom_call.1} parent=15 // pred_check_branch
          %173 = sbr.rel (%p171) target = $region24
        $region23: #{tpu_custom_call.1} parent=15 // pred_region
          %s174 = sand.u32 %s63, 1
          %s175 = scalar_lea.sflag [#allocation7], %s174
          %s176 = sand.u32 %s63, 1
          %s177 = smul.addr %s176, 256
          %s178 = scalar_lea.vmem [#allocation6], %s177
          %s179 = smul.u32 32, %s23
          %s181 = ssub.s32 4096, 4096
          %182 = vsyncadd %s175, %s181
          %s183 = smul.addr %s179, 128
          %s184 = scalar_lea.hbm %s1, %s183
          %s185 = sshll.u32 %s178, 4
          %s186 = int_to_ptr.vmem [resolvable:$true] %s185
          %191 = dma.hbm_to_vmem [thread:$0]  %s184, 4096, %s186, %s175, 128, 128, 8
        $region24: #{tpu_custom_call.1} parent=15 // pred_fallthru
          _
        // Predicated region
        $region25: #{tpu_custom_call.1} parent=15 // pred_check
          %p192 = pneg %p99
        $region26: #{tpu_custom_call.1} parent=15 // pred_check_branch
          %194 = sbr.rel (%p192) target = $region28
        $region27: #{tpu_custom_call.1} parent=15 // pred_region
          %s195 = smul.u32 2, %s23
          %p196 = scmp.lt.s32.totalorder %s195, 3
          %s197 = scalar_select %p196, %s195, 3
          %s198 = scalar_lea.vmem %s2, %s197
          %s199 = smul.u32 2, %s23
        $region28: #{tpu_custom_call.1} parent=15 // pred_fallthru
          _
      $region16: #{tpu_custom_call.1} parent=5 // pred_fallthru
        _
      %p200 = scmp.le.s32.totalorder 1, %s15
      %p201 = scmp.lt.s32.totalorder %s15, 5
      %p202 = pnand %p200, %p201
      %p203 = pneg %p202
      // Predicated region
      $region29: #{tpu_custom_call.1} parent=5 // pred_check
        _
      $region30: #{tpu_custom_call.1} parent=5 // pred_check_branch
        %205 = sbr.rel (%p202) target = $region32
      $region31: #{tpu_custom_call.1} parent=5 // pred_region
        %s206 = ssub.s32 %s15, 1
        %s207 = sand.u32 %s40, 1
        %s208 = scalar_lea.sflag [#allocation5], %s207
        %s209 = sand.u32 %s40, 1
        %s210 = smul.addr %s209, 256
        %s211 = scalar_lea.vmem [#allocation4], %s210
        // Predicated region
        $region33: #{tpu_custom_call.1} parent=31 // pred_check
          %p212 = pneg %p53
        $region34: #{tpu_custom_call.1} parent=31 // pred_check_branch
          %214 = sbr.rel (%p212) target = $region36
        $region35: #{tpu_custom_call.1} parent=31 // pred_region
          %215 = dma.done %s208, 4096
        $region36: #{tpu_custom_call.1} parent=31 // pred_fallthru
          _
        %s216 = sand.u32 %s66, 1
        %s217 = scalar_lea.sflag [#allocation7], %s216
        %s218 = sand.u32 %s66, 1
        %s219 = smul.addr %s218, 256
        %s220 = scalar_lea.vmem [#allocation6], %s219
        // Predicated region
        $region37: #{tpu_custom_call.1} parent=31 // pred_check
          %p221 = pneg %p79
        $region38: #{tpu_custom_call.1} parent=31 // pred_check_branch
          %223 = sbr.rel (%p221) target = $region40
        $region39: #{tpu_custom_call.1} parent=31 // pred_region
          %224 = dma.done %s217, 4096
        $region40: #{tpu_custom_call.1} parent=31 // pred_fallthru
          _
        %s225 = sand.u32 %s40, 1
        %s226 = scalar_lea.sflag [#allocation5], %s225
        %s227 = sand.u32 %s40, 1
        %s228 = smul.addr %s227, 256
        %s229 = scalar_lea.vmem [#allocation4], %s228
        %p230 = pneg %p53
        %p231 = pneg %p50
        %s232 = sand.u32 %s66, 1
        %s233 = scalar_lea.sflag [#allocation7], %s232
        %s234 = sand.u32 %s66, 1
        %s235 = smul.addr %s234, 256
        %s236 = scalar_lea.vmem [#allocation6], %s235
        %p237 = pneg %p79
        %p238 = pneg %p76
        %s239 = smul.u32 2, %s25
        %p240 = scmp.lt.s32.totalorder %s239, 3
        %s241 = scalar_select %p240, %s239, 3
        %s242 = scalar_lea.vmem %s2, %s241
        %p243 = pneg %p105
        %p244 = pneg %p102
        %p245 = pneg %p131
        %p246 = pneg %p128
        %s247 = smul.u32 32, %s24
        %p248 = scmp.lt.s32.totalorder %s247, 63
        %s249 = scalar_select %p248, %s247, 63
        %s250 = smul.addr %s249, 8
        %s251 = scalar_lea.vmem %s3, %s250
        %s252 = smul.u32 32, %s24
        %s253 = smul.u32 32, %s25
        %s254 = smul.u32 2, %s25
        %p255 = scmp.lt.s32.totalorder %s254, 3
        %s256 = scalar_select %p255, %s254, 3
        %s257 = scalar_lea.vmem %s2, %s256
        %s258 = smul.u32 2, %s25
        %s259 = smul.u32 32, %s24
        %p260 = scmp.lt.s32.totalorder %s259, 63
        %s261 = scalar_select %p260, %s259, 63
        %s262 = smul.addr %s261, 8
        %s263 = scalar_lea.vmem %s3, %s262
        %s264 = smul.u32 32, %s24
        %p265 = scmp.eq.s32.totalorder %s25, 0
        // Predicated region
        $region41: #{tpu_custom_call.1} parent=31 // pred_check
          %p266 = pneg %p265
        $region42: #{tpu_custom_call.1} parent=31 // pred_check_branch
          %268 = sbr.rel (%p266) target = $region44
        $region43: #{tpu_custom_call.1} parent=31 // pred_region
          %vm269 = vcmask 7168
          %270 = vst.msk [vmem:[#allocation2] sm:$0xff] %vm269, -inf
          %271 = vst.msk [vmem:[#allocation2 + $0x8] sm:$0xff] %vm269, -inf
          %272 = vst.msk [vmem:[#allocation2 + $0x10] sm:$0xff] %vm269, -inf
          %273 = vst.msk [vmem:[#allocation2 + $0x18] sm:$0xff] %vm269, -inf
          %274 = vst.msk [vmem:[#allocation2 + $0x20] sm:$0xff] %vm269, -inf
          %275 = vst.msk [vmem:[#allocation2 + $0x28] sm:$0xff] %vm269, -inf
          %276 = vst.msk [vmem:[#allocation2 + $0x30] sm:$0xff] %vm269, -inf
          %277 = vst.msk [vmem:[#allocation2 + $0x38] sm:$0xff] %vm269, -inf
          %278 = vst.msk [vmem:[#allocation2 + $0x40] sm:$0xff] %vm269, -inf
          %279 = vst.msk [vmem:[#allocation2 + $0x48] sm:$0xff] %vm269, -inf
          %280 = vst.msk [vmem:[#allocation2 + $0x50] sm:$0xff] %vm269, -inf
          %281 = vst.msk [vmem:[#allocation2 + $0x58] sm:$0xff] %vm269, -inf
          %282 = vst.msk [vmem:[#allocation2 + $0x60] sm:$0xff] %vm269, -inf
          %283 = vst.msk [vmem:[#allocation2 + $0x68] sm:$0xff] %vm269, -inf
          %284 = vst.msk [vmem:[#allocation2 + $0x70] sm:$0xff] %vm269, -inf
          %285 = vst.msk [vmem:[#allocation2 + $0x78] sm:$0xff] %vm269, -inf
          %286 = vst.msk [vmem:[#allocation2 + $0x80] sm:$0xff] %vm269, -inf
          %287 = vst.msk [vmem:[#allocation2 + $0x88] sm:$0xff] %vm269, -inf
          %288 = vst.msk [vmem:[#allocation2 + $0x90] sm:$0xff] %vm269, -inf
          %289 = vst.msk [vmem:[#allocation2 + $0x98] sm:$0xff] %vm269, -inf
          %290 = vst.msk [vmem:[#allocation2 + $0xa0] sm:$0xff] %vm269, -inf
          %291 = vst.msk [vmem:[#allocation2 + $0xa8] sm:$0xff] %vm269, -inf
          %292 = vst.msk [vmem:[#allocation2 + $0xb0] sm:$0xff] %vm269, -inf
          %293 = vst.msk [vmem:[#allocation2 + $0xb8] sm:$0xff] %vm269, -inf
          %294 = vst.msk [vmem:[#allocation2 + $0xc0] sm:$0xff] %vm269, -inf
          %295 = vst.msk [vmem:[#allocation2 + $0xc8] sm:$0xff] %vm269, -inf
          %296 = vst.msk [vmem:[#allocation2 + $0xd0] sm:$0xff] %vm269, -inf
          %297 = vst.msk [vmem:[#allocation2 + $0xd8] sm:$0xff] %vm269, -inf
          %298 = vst.msk [vmem:[#allocation2 + $0xe0] sm:$0xff] %vm269, -inf
          %299 = vst.msk [vmem:[#allocation2 + $0xe8] sm:$0xff] %vm269, -inf
          %300 = vst.msk [vmem:[#allocation2 + $0xf0] sm:$0xff] %vm269, -inf
          %301 = vst.msk [vmem:[#allocation2 + $0xf8] sm:$0xff] %vm269, -inf
          %302 = vst.msk [vmem:[#allocation3] sm:$0xff] %vm269, 0.0
          %303 = vst.msk [vmem:[#allocation3 + $0x8] sm:$0xff] %vm269, 0.0
          %304 = vst.msk [vmem:[#allocation3 + $0x10] sm:$0xff] %vm269, 0.0
          %305 = vst.msk [vmem:[#allocation3 + $0x18] sm:$0xff] %vm269, 0.0
          %306 = vst.msk [vmem:[#allocation3 + $0x20] sm:$0xff] %vm269, 0.0
          %307 = vst.msk [vmem:[#allocation3 + $0x28] sm:$0xff] %vm269, 0.0
          %308 = vst.msk [vmem:[#allocation3 + $0x30] sm:$0xff] %vm269, 0.0
          %309 = vst.msk [vmem:[#allocation3 + $0x38] sm:$0xff] %vm269, 0.0
          %310 = vst.msk [vmem:[#allocation3 + $0x40] sm:$0xff] %vm269, 0.0
          %311 = vst.msk [vmem:[#allocation3 + $0x48] sm:$0xff] %vm269, 0.0
          %312 = vst.msk [vmem:[#allocation3 + $0x50] sm:$0xff] %vm269, 0.0
          %313 = vst.msk [vmem:[#allocation3 + $0x58] sm:$0xff] %vm269, 0.0
          %314 = vst.msk [vmem:[#allocation3 + $0x60] sm:$0xff] %vm269, 0.0
          %315 = vst.msk [vmem:[#allocation3 + $0x68] sm:$0xff] %vm269, 0.0
          %316 = vst.msk [vmem:[#allocation3 + $0x70] sm:$0xff] %vm269, 0.0
          %317 = vst.msk [vmem:[#allocation3 + $0x78] sm:$0xff] %vm269, 0.0
          %318 = vst.msk [vmem:[#allocation3 + $0x80] sm:$0xff] %vm269, 0.0
          %319 = vst.msk [vmem:[#allocation3 + $0x88] sm:$0xff] %vm269, 0.0
          %320 = vst.msk [vmem:[#allocation3 + $0x90] sm:$0xff] %vm269, 0.0
          %321 = vst.msk [vmem:[#allocation3 + $0x98] sm:$0xff] %vm269, 0.0
          %322 = vst.msk [vmem:[#allocation3 + $0xa0] sm:$0xff] %vm269, 0.0
          %323 = vst.msk [vmem:[#allocation3 + $0xa8] sm:$0xff] %vm269, 0.0
          %324 = vst.msk [vmem:[#allocation3 + $0xb0] sm:$0xff] %vm269, 0.0
          %325 = vst.msk [vmem:[#allocation3 + $0xb8] sm:$0xff] %vm269, 0.0
          %326 = vst.msk [vmem:[#allocation3 + $0xc0] sm:$0xff] %vm269, 0.0
          %327 = vst.msk [vmem:[#allocation3 + $0xc8] sm:$0xff] %vm269, 0.0
          %328 = vst.msk [vmem:[#allocation3 + $0xd0] sm:$0xff] %vm269, 0.0
          %329 = vst.msk [vmem:[#allocation3 + $0xd8] sm:$0xff] %vm269, 0.0
          %330 = vst.msk [vmem:[#allocation3 + $0xe0] sm:$0xff] %vm269, 0.0
          %331 = vst.msk [vmem:[#allocation3 + $0xe8] sm:$0xff] %vm269, 0.0
          %332 = vst.msk [vmem:[#allocation3 + $0xf0] sm:$0xff] %vm269, 0.0
          %333 = vst.msk [vmem:[#allocation3 + $0xf8] sm:$0xff] %vm269, 0.0
        $region44: #{tpu_custom_call.1} parent=31 // pred_fallthru
          _
        %v334 = vld [vmem:[%s211] sm:$0xff]
        %v335 = vld [vmem:[%s211 + $0x8] sm:$0xff]
        %v336 = vld [vmem:[%s211 + $0x10] sm:$0xff]
        %v337 = vld [vmem:[%s211 + $0x18] sm:$0xff]
        %v338 = vld [vmem:[%s211 + $0x20] sm:$0xff]
        %v339 = vld [vmem:[%s211 + $0x28] sm:$0xff]
        %v340 = vld [vmem:[%s211 + $0x30] sm:$0xff]
        %v341 = vld [vmem:[%s211 + $0x38] sm:$0xff]
        %v342 = vld [vmem:[%s211 + $0x40] sm:$0xff]
        %v343 = vld [vmem:[%s211 + $0x48] sm:$0xff]
        %v344 = vld [vmem:[%s211 + $0x50] sm:$0xff]
        %v345 = vld [vmem:[%s211 + $0x58] sm:$0xff]
        %v346 = vld [vmem:[%s211 + $0x60] sm:$0xff]
        %v347 = vld [vmem:[%s211 + $0x68] sm:$0xff]
        %v348 = vld [vmem:[%s211 + $0x70] sm:$0xff]
        %v349 = vld [vmem:[%s211 + $0x78] sm:$0xff]
        %v350 = vld [vmem:[%s211 + $0x80] sm:$0xff]
        %v351 = vld [vmem:[%s211 + $0x88] sm:$0xff]
        %v352 = vld [vmem:[%s211 + $0x90] sm:$0xff]
        %v353 = vld [vmem:[%s211 + $0x98] sm:$0xff]
        %v354 = vld [vmem:[%s211 + $0xa0] sm:$0xff]
        %v355 = vld [vmem:[%s211 + $0xa8] sm:$0xff]
        %v356 = vld [vmem:[%s211 + $0xb0] sm:$0xff]
        %v357 = vld [vmem:[%s211 + $0xb8] sm:$0xff]
        %v358 = vld [vmem:[%s211 + $0xc0] sm:$0xff]
        %v359 = vld [vmem:[%s211 + $0xc8] sm:$0xff]
        %v360 = vld [vmem:[%s211 + $0xd0] sm:$0xff]
        %v361 = vld [vmem:[%s211 + $0xd8] sm:$0xff]
        %v362 = vld [vmem:[%s211 + $0xe0] sm:$0xff]
        %v363 = vld [vmem:[%s211 + $0xe8] sm:$0xff]
        %v364 = vld [vmem:[%s211 + $0xf0] sm:$0xff]
        %v365 = vld [vmem:[%s211 + $0xf8] sm:$0xff]
        %v366 = vld [vmem:[%s220] sm:$0xff]
        %v367 = vld [vmem:[%s220 + $0x8] sm:$0xff]
        %v368 = vld [vmem:[%s220 + $0x10] sm:$0xff]
        %v369 = vld [vmem:[%s220 + $0x18] sm:$0xff]
        %v370 = vld [vmem:[%s220 + $0x20] sm:$0xff]
        %v371 = vld [vmem:[%s220 + $0x28] sm:$0xff]
        %v372 = vld [vmem:[%s220 + $0x30] sm:$0xff]
        %v373 = vld [vmem:[%s220 + $0x38] sm:$0xff]
        %v374 = vld [vmem:[%s220 + $0x40] sm:$0xff]
        %v375 = vld [vmem:[%s220 + $0x48] sm:$0xff]
        %v376 = vld [vmem:[%s220 + $0x50] sm:$0xff]
        %v377 = vld [vmem:[%s220 + $0x58] sm:$0xff]
        %v378 = vld [vmem:[%s220 + $0x60] sm:$0xff]
        %v379 = vld [vmem:[%s220 + $0x68] sm:$0xff]
        %v380 = vld [vmem:[%s220 + $0x70] sm:$0xff]
        %v381 = vld [vmem:[%s220 + $0x78] sm:$0xff]
        %v382 = vld [vmem:[%s220 + $0x80] sm:$0xff]
        %v383 = vld [vmem:[%s220 + $0x88] sm:$0xff]
        %v384 = vld [vmem:[%s220 + $0x90] sm:$0xff]
        %v385 = vld [vmem:[%s220 + $0x98] sm:$0xff]
        %v386 = vld [vmem:[%s220 + $0xa0] sm:$0xff]
        %v387 = vld [vmem:[%s220 + $0xa8] sm:$0xff]
        %v388 = vld [vmem:[%s220 + $0xb0] sm:$0xff]
        %v389 = vld [vmem:[%s220 + $0xb8] sm:$0xff]
        %v390 = vld [vmem:[%s220 + $0xc0] sm:$0xff]
        %v391 = vld [vmem:[%s220 + $0xc8] sm:$0xff]
        %v392 = vld [vmem:[%s220 + $0xd0] sm:$0xff]
        %v393 = vld [vmem:[%s220 + $0xd8] sm:$0xff]
        %v394 = vld [vmem:[%s220 + $0xe0] sm:$0xff]
        %v395 = vld [vmem:[%s220 + $0xe8] sm:$0xff]
        %v396 = vld [vmem:[%s220 + $0xf0] sm:$0xff]
        %v397 = vld [vmem:[%s220 + $0xf8] sm:$0xff]
        %398 = vmatprep.subr.mxu0 0.0
        %399 = vmatpush1.xpose.msra.mxu0 %v366
        %400 = vmatprep.subr.mxu0 0.0
        %401 = vmatpush1.xpose.msra.mxu0 %v367
        %402 = vmatprep.subr.mxu0 0.0
        %403 = vmatpush1.xpose.msra.mxu0 %v368
        %404 = vmatprep.subr.mxu0 0.0
        %405 = vmatpush1.xpose.msra.mxu0 %v369
        %406 = vmatprep.subr.mxu0 0.0
        %407 = vmatpush1.xpose.msra.mxu0 %v370
        %408 = vmatprep.subr.mxu0 0.0
        %409 = vmatpush1.xpose.msra.mxu0 %v371
        %410 = vmatprep.subr.mxu0 0.0
        %411 = vmatpush1.xpose.msra.mxu0 %v372
        %412 = vmatprep.subr.mxu0 0.0
        %413 = vmatpush1.xpose.msra.mxu0 %v373
        %414 = vmatprep.subr.mxu0 0.0
        %415 = vmatpush1.xpose.msra.mxu0 %v374
        %416 = vmatprep.subr.mxu0 0.0
        %417 = vmatpush1.xpose.msra.mxu0 %v375
        %418 = vmatprep.subr.mxu0 0.0
        %419 = vmatpush1.xpose.msra.mxu0 %v376
        %420 = vmatprep.subr.mxu0 0.0
        %421 = vmatpush1.xpose.msra.mxu0 %v377
        %422 = vmatprep.subr.mxu0 0.0
        %423 = vmatpush1.xpose.msra.mxu0 %v378
        %424 = vmatprep.subr.mxu0 0.0
        %425 = vmatpush1.xpose.msra.mxu0 %v379
        %426 = vmatprep.subr.mxu0 0.0
        %427 = vmatpush1.xpose.msra.mxu0 %v380
        %428 = vmatprep.subr.mxu0 0.0
        %429 = vmatpush1.xpose.msra.mxu0 %v381
        %430 = vmatprep.subr.mxu0 0.0
        %431 = vmatpush1.xpose.msra.mxu0 %v382
        %432 = vmatprep.subr.mxu0 0.0
        %433 = vmatpush1.xpose.msra.mxu0 %v383
        %434 = vmatprep.subr.mxu0 0.0
        %435 = vmatpush1.xpose.msra.mxu0 %v384
        %436 = vmatprep.subr.mxu0 0.0
        %437 = vmatpush1.xpose.msra.mxu0 %v385
        %438 = vmatprep.subr.mxu0 0.0
        %439 = vmatpush1.xpose.msra.mxu0 %v386
        %440 = vmatprep.subr.mxu0 0.0
        %441 = vmatpush1.xpose.msra.mxu0 %v387
        %442 = vmatprep.subr.mxu0 0.0
        %443 = vmatpush1.xpose.msra.mxu0 %v388
        %444 = vmatprep.subr.mxu0 0.0
        %445 = vmatpush1.xpose.msra.mxu0 %v389
        %446 = vmatprep.subr.mxu0 0.0
        %447 = vmatpush1.xpose.msra.mxu0 %v390
        %448 = vmatprep.subr.mxu0 0.0
        %449 = vmatpush1.xpose.msra.mxu0 %v391
        %450 = vmatprep.subr.mxu0 0.0
        %451 = vmatpush1.xpose.msra.mxu0 %v392
        %452 = vmatprep.subr.mxu0 0.0
        %453 = vmatpush1.xpose.msra.mxu0 %v393
        %454 = vmatprep.subr.mxu0 0.0
        %455 = vmatpush1.xpose.msra.mxu0 %v394
        %456 = vmatprep.subr.mxu0 0.0
        %457 = vmatpush1.xpose.msra.mxu0 %v395
        %458 = vmatprep.subr.mxu0 0.0
        %459 = vmatpush1.xpose.msra.mxu0 %v396
        %460 = vmatprep.subr.mxu0 0.0
        %461 = vmatpush1.xpose.msra.mxu0 %v397
        %462 = vmatprep.mubr.f32.mxu0 0.0
        %463 = vmatmul.mubr.f32.gmra.mrb[0].mxu0 %v334
        %v464 = vpop.f32.mrb[0].mxu0
        %v465 = vadd.f32 0.0, %v464
        %v466 = vpop.f32.mrb[0].mxu0
        %v467 = vadd.f32 0.0, %v466
        %468 = vmatprep.mubr.f32.mxu0 0.0
        %469 = vmatmul.mubr.f32.gmra.mrb[0].mxu0 %v335
        %v470 = vpop.f32.mrb[0].mxu0
        %v471 = vadd.f32 0.0, %v470
        %v472 = vpop.f32.mrb[0].mxu0
        %v473 = vadd.f32 0.0, %v472
        %474 = vmatprep.mubr.f32.mxu0 0.0
        %475 = vmatmul.mubr.f32.gmra.mrb[0].mxu0 %v336
        %v476 = vpop.f32.mrb[0].mxu0
        %v477 = vadd.f32 0.0, %v476
        %v478 = vpop.f32.mrb[0].mxu0
        %v479 = vadd.f32 0.0, %v478
        %480 = vmatprep.mubr.f32.mxu0 0.0
        %481 = vmatmul.mubr.f32.gmra.mrb[0].mxu0 %v337
        %v482 = vpop.f32.mrb[0].mxu0
        %v483 = vadd.f32 0.0, %v482
        %v484 = vpop.f32.mrb[0].mxu0
        %v485 = vadd.f32 0.0, %v484
        %486 = vmatprep.mubr.f32.mxu0 0.0
        %487 = vmatmul.mubr.f32.gmra.mrb[0].mxu0 %v338
        %v488 = vpop.f32.mrb[0].mxu0
        %v489 = vadd.f32 0.0, %v488
        %v490 = vpop.f32.mrb[0].mxu0
        %v491 = vadd.f32 0.0, %v490
        %492 = vmatprep.mubr.f32.mxu0 0.0
        %493 = vmatmul.mubr.f32.gmra.mrb[0].mxu0 %v339
        %v494 = vpop.f32.mrb[0].mxu0
        %v495 = vadd.f32 0.0, %v494
        %v496 = vpop.f32.mrb[0].mxu0
        %v497 = vadd.f32 0.0, %v496
        %498 = vmatprep.mubr.f32.mxu0 0.0
        %499 = vmatmul.mubr.f32.gmra.mrb[0].mxu0 %v340
        %v500 = vpop.f32.mrb[0].mxu0
        %v501 = vadd.f32 0.0, %v500
        %v502 = vpop.f32.mrb[0].mxu0
        %v503 = vadd.f32 0.0, %v502
        %504 = vmatprep.mubr.f32.mxu0 0.0
        %505 = vmatmul.mubr.f32.gmra.mrb[0].mxu0 %v341
        %v506 = vpop.f32.mrb[0].mxu0
        %v507 = vadd.f32 0.0, %v506
        %v508 = vpop.f32.mrb[0].mxu0
        %v509 = vadd.f32 0.0, %v508
        %510 = vmatprep.mubr.f32.mxu0 0.0
        %511 = vmatmul.mubr.f32.gmra.mrb[0].mxu0 %v342
        %v512 = vpop.f32.mrb[0].mxu0
        %v513 = vadd.f32 0.0, %v512
        %v514 = vpop.f32.mrb[0].mxu0
        %v515 = vadd.f32 0.0, %v514
        %516 = vmatprep.mubr.f32.mxu0 0.0
        %517 = vmatmul.mubr.f32.gmra.mrb[0].mxu0 %v343
        %v518 = vpop.f32.mrb[0].mxu0
        %v519 = vadd.f32 0.0, %v518
        %v520 = vpop.f32.mrb[0].mxu0
        %v521 = vadd.f32 0.0, %v520
        %522 = vmatprep.mubr.f32.mxu0 0.0
        %523 = vmatmul.mubr.f32.gmra.mrb[0].mxu0 %v344
        %v524 = vpop.f32.mrb[0].mxu0
        %v525 = vadd.f32 0.0, %v524
        %v526 = vpop.f32.mrb[0].mxu0
        %v527 = vadd.f32 0.0, %v526
        %528 = vmatprep.mubr.f32.mxu0 0.0
        %529 = vmatmul.mubr.f32.gmra.mrb[0].mxu0 %v345
        %v530 = vpop.f32.mrb[0].mxu0
        %v531 = vadd.f32 0.0, %v530
        %v532 = vpop.f32.mrb[0].mxu0
        %v533 = vadd.f32 0.0, %v532
        %534 = vmatprep.mubr.f32.mxu0 0.0
        %535 = vmatmul.mubr.f32.gmra.mrb[0].mxu0 %v346
        %v536 = vpop.f32.mrb[0].mxu0
        %v537 = vadd.f32 0.0, %v536
        %v538 = vpop.f32.mrb[0].mxu0
        %v539 = vadd.f32 0.0, %v538
        %540 = vmatprep.mubr.f32.mxu0 0.0
        %541 = vmatmul.mubr.f32.gmra.mrb[0].mxu0 %v347
        %v542 = vpop.f32.mrb[0].mxu0
        %v543 = vadd.f32 0.0, %v542
        %v544 = vpop.f32.mrb[0].mxu0
        %v545 = vadd.f32 0.0, %v544
        %546 = vmatprep.mubr.f32.mxu0 0.0
        %547 = vmatmul.mubr.f32.gmra.mrb[0].mxu0 %v348
        %v548 = vpop.f32.mrb[0].mxu0
        %v549 = vadd.f32 0.0, %v548
        %v550 = vpop.f32.mrb[0].mxu0
        %v551 = vadd.f32 0.0, %v550
        %552 = vmatprep.mubr.f32.mxu0 0.0
        %553 = vmatmul.mubr.f32.gmra.mrb[0].mxu0 %v349
        %v554 = vpop.f32.mrb[0].mxu0
        %v555 = vadd.f32 0.0, %v554
        %v556 = vpop.f32.mrb[0].mxu0
        %v557 = vadd.f32 0.0, %v556
        %558 = vmatprep.mubr.f32.mxu0 0.0
        %559 = vmatmul.mubr.f32.gmra.mrb[0].mxu0 %v350
        %v560 = vpop.f32.mrb[0].mxu0
        %v561 = vadd.f32 0.0, %v560
        %v562 = vpop.f32.mrb[0].mxu0
        %v563 = vadd.f32 0.0, %v562
        %564 = vmatprep.mubr.f32.mxu0 0.0
        %565 = vmatmul.mubr.f32.gmra.mrb[0].mxu0 %v351
        %v566 = vpop.f32.mrb[0].mxu0
        %v567 = vadd.f32 0.0, %v566
        %v568 = vpop.f32.mrb[0].mxu0
        %v569 = vadd.f32 0.0, %v568
        %570 = vmatprep.mubr.f32.mxu0 0.0
        %571 = vmatmul.mubr.f32.gmra.mrb[0].mxu0 %v352
        %v572 = vpop.f32.mrb[0].mxu0
        %v573 = vadd.f32 0.0, %v572
        %v574 = vpop.f32.mrb[0].mxu0
        %v575 = vadd.f32 0.0, %v574
        %576 = vmatprep.mubr.f32.mxu0 0.0
        %577 = vmatmul.mubr.f32.gmra.mrb[0].mxu0 %v353
        %v578 = vpop.f32.mrb[0].mxu0
        %v579 = vadd.f32 0.0, %v578
        %v580 = vpop.f32.mrb[0].mxu0
        %v581 = vadd.f32 0.0, %v580
        %582 = vmatprep.mubr.f32.mxu0 0.0
        %583 = vmatmul.mubr.f32.gmra.mrb[0].mxu0 %v354
        %v584 = vpop.f32.mrb[0].mxu0
        %v585 = vadd.f32 0.0, %v584
        %v586 = vpop.f32.mrb[0].mxu0
        %v587 = vadd.f32 0.0, %v586
        %588 = vmatprep.mubr.f32.mxu0 0.0
        %589 = vmatmul.mubr.f32.gmra.mrb[0].mxu0 %v355
        %v590 = vpop.f32.mrb[0].mxu0
        %v591 = vadd.f32 0.0, %v590
        %v592 = vpop.f32.mrb[0].mxu0
        %v593 = vadd.f32 0.0, %v592
        %594 = vmatprep.mubr.f32.mxu0 0.0
        %595 = vmatmul.mubr.f32.gmra.mrb[0].mxu0 %v356
        %v596 = vpop.f32.mrb[0].mxu0
        %v597 = vadd.f32 0.0, %v596
        %v598 = vpop.f32.mrb[0].mxu0
        %v599 = vadd.f32 0.0, %v598
        %600 = vmatprep.mubr.f32.mxu0 0.0
        %601 = vmatmul.mubr.f32.gmra.mrb[0].mxu0 %v357
        %v602 = vpop.f32.mrb[0].mxu0
        %v603 = vadd.f32 0.0, %v602
        %v604 = vpop.f32.mrb[0].mxu0
        %v605 = vadd.f32 0.0, %v604
        %606 = vmatprep.mubr.f32.mxu0 0.0
        %607 = vmatmul.mubr.f32.gmra.mrb[0].mxu0 %v358
        %v608 = vpop.f32.mrb[0].mxu0
        %v609 = vadd.f32 0.0, %v608
        %v610 = vpop.f32.mrb[0].mxu0
        %v611 = vadd.f32 0.0, %v610
        %612 = vmatprep.mubr.f32.mxu0 0.0
        %613 = vmatmul.mubr.f32.gmra.mrb[0].mxu0 %v359
        %v614 = vpop.f32.mrb[0].mxu0
        %v615 = vadd.f32 0.0, %v614
        %v616 = vpop.f32.mrb[0].mxu0
        %v617 = vadd.f32 0.0, %v616
        %618 = vmatprep.mubr.f32.mxu0 0.0
        %619 = vmatmul.mubr.f32.gmra.mrb[0].mxu0 %v360
        %v620 = vpop.f32.mrb[0].mxu0
        %v621 = vadd.f32 0.0, %v620
        %v622 = vpop.f32.mrb[0].mxu0
        %v623 = vadd.f32 0.0, %v622
        %624 = vmatprep.mubr.f32.mxu0 0.0
        %625 = vmatmul.mubr.f32.gmra.mrb[0].mxu0 %v361
        %v626 = vpop.f32.mrb[0].mxu0
        %v627 = vadd.f32 0.0, %v626
        %v628 = vpop.f32.mrb[0].mxu0
        %v629 = vadd.f32 0.0, %v628
        %630 = vmatprep.mubr.f32.mxu0 0.0
        %631 = vmatmul.mubr.f32.gmra.mrb[0].mxu0 %v362
        %v632 = vpop.f32.mrb[0].mxu0
        %v633 = vadd.f32 0.0, %v632
        %v634 = vpop.f32.mrb[0].mxu0
        %v635 = vadd.f32 0.0, %v634
        %636 = vmatprep.mubr.f32.mxu0 0.0
        %637 = vmatmul.mubr.f32.gmra.mrb[0].mxu0 %v363
        %v638 = vpop.f32.mrb[0].mxu0
        %v639 = vadd.f32 0.0, %v638
        %v640 = vpop.f32.mrb[0].mxu0
        %v641 = vadd.f32 0.0, %v640
        %642 = vmatprep.mubr.f32.mxu0 0.0
        %643 = vmatmul.mubr.f32.gmra.mrb[0].mxu0 %v364
        %v644 = vpop.f32.mrb[0].mxu0
        %v645 = vadd.f32 0.0, %v644
        %v646 = vpop.f32.mrb[0].mxu0
        %v647 = vadd.f32 0.0, %v646
        %648 = vmatprep.mubr.f32.mxu0 0.0
        %649 = vmatmul.mubr.f32.gmra.mrb[0].mxu0 %v365
        %v650 = vpop.f32.mrb[0].mxu0
        %v651 = vadd.f32 0.0, %v650
        %v652 = vpop.f32.mrb[0].mxu0
        %v653 = vadd.f32 0.0, %v652
        %654 = vdwg.mxu0
        %v655 = vld [vmem:[#allocation2] sm:$0xff]
        %v656 = vld [vmem:[#allocation2 + $0x8] sm:$0xff]
        %v657 = vld [vmem:[#allocation2 + $0x10] sm:$0xff]
        %v658 = vld [vmem:[#allocation2 + $0x18] sm:$0xff]
        %v659 = vld [vmem:[#allocation2 + $0x20] sm:$0xff]
        %v660 = vld [vmem:[#allocation2 + $0x28] sm:$0xff]
        %v661 = vld [vmem:[#allocation2 + $0x30] sm:$0xff]
        %v662 = vld [vmem:[#allocation2 + $0x38] sm:$0xff]
        %v663 = vld [vmem:[#allocation2 + $0x40] sm:$0xff]
        %v664 = vld [vmem:[#allocation2 + $0x48] sm:$0xff]
        %v665 = vld [vmem:[#allocation2 + $0x50] sm:$0xff]
        %v666 = vld [vmem:[#allocation2 + $0x58] sm:$0xff]
        %v667 = vld [vmem:[#allocation2 + $0x60] sm:$0xff]
        %v668 = vld [vmem:[#allocation2 + $0x68] sm:$0xff]
        %v669 = vld [vmem:[#allocation2 + $0x70] sm:$0xff]
        %v670 = vld [vmem:[#allocation2 + $0x78] sm:$0xff]
        %v671 = vld [vmem:[#allocation2 + $0x80] sm:$0xff]
        %v672 = vld [vmem:[#allocation2 + $0x88] sm:$0xff]
        %v673 = vld [vmem:[#allocation2 + $0x90] sm:$0xff]
        %v674 = vld [vmem:[#allocation2 + $0x98] sm:$0xff]
        %v675 = vld [vmem:[#allocation2 + $0xa0] sm:$0xff]
        %v676 = vld [vmem:[#allocation2 + $0xa8] sm:$0xff]
        %v677 = vld [vmem:[#allocation2 + $0xb0] sm:$0xff]
        %v678 = vld [vmem:[#allocation2 + $0xb8] sm:$0xff]
        %v679 = vld [vmem:[#allocation2 + $0xc0] sm:$0xff]
        %v680 = vld [vmem:[#allocation2 + $0xc8] sm:$0xff]
        %v681 = vld [vmem:[#allocation2 + $0xd0] sm:$0xff]
        %v682 = vld [vmem:[#allocation2 + $0xd8] sm:$0xff]
        %v683 = vld [vmem:[#allocation2 + $0xe0] sm:$0xff]
        %v684 = vld [vmem:[#allocation2 + $0xe8] sm:$0xff]
        %v685 = vld [vmem:[#allocation2 + $0xf0] sm:$0xff]
        %v686 = vld [vmem:[#allocation2 + $0xf8] sm:$0xff]
        %v687 = vmax.f32 %v465, %v467
        %688 = vmax.xlane.f32.xlu0 %v687
        %v689 = vpop.xlane.xlu0 %688
        %v690 = vmax.f32 %v471, %v473
        %691 = vmax.xlane.f32.xlu0 %v690
        %v692 = vpop.xlane.xlu0 %691
        %v693 = vmax.f32 %v477, %v479
        %694 = vmax.xlane.f32.xlu0 %v693
        %v695 = vpop.xlane.xlu0 %694
        %v696 = vmax.f32 %v483, %v485
        %697 = vmax.xlane.f32.xlu0 %v696
        %v698 = vpop.xlane.xlu0 %697
        %v699 = vmax.f32 %v489, %v491
        %700 = vmax.xlane.f32.xlu0 %v699
        %v701 = vpop.xlane.xlu0 %700
        %v702 = vmax.f32 %v495, %v497
        %703 = vmax.xlane.f32.xlu0 %v702
        %v704 = vpop.xlane.xlu0 %703
        %v705 = vmax.f32 %v501, %v503
        %706 = vmax.xlane.f32.xlu0 %v705
        %v707 = vpop.xlane.xlu0 %706
        %v708 = vmax.f32 %v507, %v509
        %709 = vmax.xlane.f32.xlu0 %v708
        %v710 = vpop.xlane.xlu0 %709
        %v711 = vmax.f32 %v513, %v515
        %712 = vmax.xlane.f32.xlu0 %v711
        %v713 = vpop.xlane.xlu0 %712
        %v714 = vmax.f32 %v519, %v521
        %715 = vmax.xlane.f32.xlu0 %v714
        %v716 = vpop.xlane.xlu0 %715
        %v717 = vmax.f32 %v525, %v527
        %718 = vmax.xlane.f32.xlu0 %v717
        %v719 = vpop.xlane.xlu0 %718
        %v720 = vmax.f32 %v531, %v533
        %721 = vmax.xlane.f32.xlu0 %v720
        %v722 = vpop.xlane.xlu0 %721
        %v723 = vmax.f32 %v537, %v539
        %724 = vmax.xlane.f32.xlu0 %v723
        %v725 = vpop.xlane.xlu0 %724
        %v726 = vmax.f32 %v543, %v545
        %727 = vmax.xlane.f32.xlu0 %v726
        %v728 = vpop.xlane.xlu0 %727
        %v729 = vmax.f32 %v549, %v551
        %730 = vmax.xlane.f32.xlu0 %v729
        %v731 = vpop.xlane.xlu0 %730
        %v732 = vmax.f32 %v555, %v557
        %733 = vmax.xlane.f32.xlu0 %v732
        %v734 = vpop.xlane.xlu0 %733
        %v735 = vmax.f32 %v561, %v563
        %736 = vmax.xlane.f32.xlu0 %v735
        %v737 = vpop.xlane.xlu0 %736
        %v738 = vmax.f32 %v567, %v569
        %739 = vmax.xlane.f32.xlu0 %v738
        %v740 = vpop.xlane.xlu0 %739
        %v741 = vmax.f32 %v573, %v575
        %742 = vmax.xlane.f32.xlu0 %v741
        %v743 = vpop.xlane.xlu0 %742
        %v744 = vmax.f32 %v579, %v581
        %745 = vmax.xlane.f32.xlu0 %v744
        %v746 = vpop.xlane.xlu0 %745
        %v747 = vmax.f32 %v585, %v587
        %748 = vmax.xlane.f32.xlu0 %v747
        %v749 = vpop.xlane.xlu0 %748
        %v750 = vmax.f32 %v591, %v593
        %751 = vmax.xlane.f32.xlu0 %v750
        %v752 = vpop.xlane.xlu0 %751
        %v753 = vmax.f32 %v597, %v599
        %754 = vmax.xlane.f32.xlu0 %v753
        %v755 = vpop.xlane.xlu0 %754
        %v756 = vmax.f32 %v603, %v605
        %757 = vmax.xlane.f32.xlu0 %v756
        %v758 = vpop.xlane.xlu0 %757
        %v759 = vmax.f32 %v609, %v611
        %760 = vmax.xlane.f32.xlu0 %v759
        %v761 = vpop.xlane.xlu0 %760
        %v762 = vmax.f32 %v615, %v617
        %763 = vmax.xlane.f32.xlu0 %v762
        %v764 = vpop.xlane.xlu0 %763
        %v765 = vmax.f32 %v621, %v623
        %766 = vmax.xlane.f32.xlu0 %v765
        %v767 = vpop.xlane.xlu0 %766
        %v768 = vmax.f32 %v627, %v629
        %769 = vmax.xlane.f32.xlu0 %v768
        %v770 = vpop.xlane.xlu0 %769
        %v771 = vmax.f32 %v633, %v635
        %772 = vmax.xlane.f32.xlu0 %v771
        %v773 = vpop.xlane.xlu0 %772
        %v774 = vmax.f32 %v639, %v641
        %775 = vmax.xlane.f32.xlu0 %v774
        %v776 = vpop.xlane.xlu0 %775
        %v777 = vmax.f32 %v645, %v647
        %778 = vmax.xlane.f32.xlu0 %v777
        %v779 = vpop.xlane.xlu0 %778
        %v780 = vmax.f32 %v651, %v653
        %781 = vmax.xlane.f32.xlu0 %v780
        %v782 = vpop.xlane.xlu0 %781
        %v783 = vmax.f32 %v655, %v689
        %v784 = vmax.f32 %v656, %v692
        %v785 = vmax.f32 %v657, %v695
        %v786 = vmax.f32 %v658, %v698
        %v787 = vmax.f32 %v659, %v701
        %v788 = vmax.f32 %v660, %v704
        %v789 = vmax.f32 %v661, %v707
        %v790 = vmax.f32 %v662, %v710
        %v791 = vmax.f32 %v663, %v713
        %v792 = vmax.f32 %v664, %v716
        %v793 = vmax.f32 %v665, %v719
        %v794 = vmax.f32 %v666, %v722
        %v795 = vmax.f32 %v667, %v725
        %v796 = vmax.f32 %v668, %v728
        %v797 = vmax.f32 %v669, %v731
        %v798 = vmax.f32 %v670, %v734
        %v799 = vmax.f32 %v671, %v737
        %v800 = vmax.f32 %v672, %v740
        %v801 = vmax.f32 %v673, %v743
        %v802 = vmax.f32 %v674, %v746
        %v803 = vmax.f32 %v675, %v749
        %v804 = vmax.f32 %v676, %v752
        %v805 = vmax.f32 %v677, %v755
        %v806 = vmax.f32 %v678, %v758
        %v807 = vmax.f32 %v679, %v761
        %v808 = vmax.f32 %v680, %v764
        %v809 = vmax.f32 %v681, %v767
        %v810 = vmax.f32 %v682, %v770
        %v811 = vmax.f32 %v683, %v773
        %v812 = vmax.f32 %v684, %v776
        %v813 = vmax.f32 %v685, %v779
        %v814 = vmax.f32 %v686, %v782
        %v815 = vsub.f32 %v655, %v783
        %v816 = vsub.f32 %v656, %v784
        %v817 = vsub.f32 %v657, %v785
        %v818 = vsub.f32 %v658, %v786
        %v819 = vsub.f32 %v659, %v787
        %v820 = vsub.f32 %v660, %v788
        %v821 = vsub.f32 %v661, %v789
        %v822 = vsub.f32 %v662, %v790
        %v823 = vsub.f32 %v663, %v791
        %v824 = vsub.f32 %v664, %v792
        %v825 = vsub.f32 %v665, %v793
        %v826 = vsub.f32 %v666, %v794
        %v827 = vsub.f32 %v667, %v795
        %v828 = vsub.f32 %v668, %v796
        %v829 = vsub.f32 %v669, %v797
        %v830 = vsub.f32 %v670, %v798
        %v831 = vsub.f32 %v671, %v799
        %v832 = vsub.f32 %v672, %v800
        %v833 = vsub.f32 %v673, %v801
        %v834 = vsub.f32 %v674, %v802
        %v835 = vsub.f32 %v675, %v803
        %v836 = vsub.f32 %v676, %v804
        %v837 = vsub.f32 %v677, %v805
        %v838 = vsub.f32 %v678, %v806
        %v839 = vsub.f32 %v679, %v807
        %v840 = vsub.f32 %v680, %v808
        %v841 = vsub.f32 %v681, %v809
        %v842 = vsub.f32 %v682, %v810
        %v843 = vsub.f32 %v683, %v811
        %v844 = vsub.f32 %v684, %v812
        %v845 = vsub.f32 %v685, %v813
        %v846 = vsub.f32 %v686, %v814
        %v847 = vmul.f32 %v815, 1.442695
        %v848 = vpow.pop %v847
        %v849 = vmul.f32 %v816, 1.442695
        %v850 = vpow.pop %v849
        %v851 = vmul.f32 %v817, 1.442695
        %v852 = vpow.pop %v851
        %v853 = vmul.f32 %v818, 1.442695
        %v854 = vpow.pop %v853
        %v855 = vmul.f32 %v819, 1.442695
        %v856 = vpow.pop %v855
        %v857 = vmul.f32 %v820, 1.442695
        %v858 = vpow.pop %v857
        %v859 = vmul.f32 %v821, 1.442695
        %v860 = vpow.pop %v859
        %v861 = vmul.f32 %v822, 1.442695
        %v862 = vpow.pop %v861
        %v863 = vmul.f32 %v823, 1.442695
        %v864 = vpow.pop %v863
        %v865 = vmul.f32 %v824, 1.442695
        %v866 = vpow.pop %v865
        %v867 = vmul.f32 %v825, 1.442695
        %v868 = vpow.pop %v867
        %v869 = vmul.f32 %v826, 1.442695
        %v870 = vpow.pop %v869
        %v871 = vmul.f32 %v827, 1.442695
        %v872 = vpow.pop %v871
        %v873 = vmul.f32 %v828, 1.442695
        %v874 = vpow.pop %v873
        %v875 = vmul.f32 %v829, 1.442695
        %v876 = vpow.pop %v875
        %v877 = vmul.f32 %v830, 1.442695
        %v878 = vpow.pop %v877
        %v879 = vmul.f32 %v831, 1.442695
        %v880 = vpow.pop %v879
        %v881 = vmul.f32 %v832, 1.442695
        %v882 = vpow.pop %v881
        %v883 = vmul.f32 %v833, 1.442695
        %v884 = vpow.pop %v883
        %v885 = vmul.f32 %v834, 1.442695
        %v886 = vpow.pop %v885
        %v887 = vmul.f32 %v835, 1.442695
        %v888 = vpow.pop %v887
        %v889 = vmul.f32 %v836, 1.442695
        %v890 = vpow.pop %v889
        %v891 = vmul.f32 %v837, 1.442695
        %v892 = vpow.pop %v891
        %v893 = vmul.f32 %v838, 1.442695
        %v894 = vpow.pop %v893
        %v895 = vmul.f32 %v839, 1.442695
        %v896 = vpow.pop %v895
        %v897 = vmul.f32 %v840, 1.442695
        %v898 = vpow.pop %v897
        %v899 = vmul.f32 %v841, 1.442695
        %v900 = vpow.pop %v899
        %v901 = vmul.f32 %v842, 1.442695
        %v902 = vpow.pop %v901
        %v903 = vmul.f32 %v843, 1.442695
        %v904 = vpow.pop %v903
        %v905 = vmul.f32 %v844, 1.442695
        %v906 = vpow.pop %v905
        %v907 = vmul.f32 %v845, 1.442695
        %v908 = vpow.pop %v907
        %v909 = vmul.f32 %v846, 1.442695
        %v910 = vpow.pop %v909
        %v911 = vld [vmem:[#allocation3] sm:$0xff]
        %v912 = vld [vmem:[#allocation3 + $0x8] sm:$0xff]
        %v913 = vld [vmem:[#allocation3 + $0x10] sm:$0xff]
        %v914 = vld [vmem:[#allocation3 + $0x18] sm:$0xff]
        %v915 = vld [vmem:[#allocation3 + $0x20] sm:$0xff]
        %v916 = vld [vmem:[#allocation3 + $0x28] sm:$0xff]
        %v917 = vld [vmem:[#allocation3 + $0x30] sm:$0xff]
        %v918 = vld [vmem:[#allocation3 + $0x38] sm:$0xff]
        %v919 = vld [vmem:[#allocation3 + $0x40] sm:$0xff]
        %v920 = vld [vmem:[#allocation3 + $0x48] sm:$0xff]
        %v921 = vld [vmem:[#allocation3 + $0x50] sm:$0xff]
        %v922 = vld [vmem:[#allocation3 + $0x58] sm:$0xff]
        %v923 = vld [vmem:[#allocation3 + $0x60] sm:$0xff]
        %v924 = vld [vmem:[#allocation3 + $0x68] sm:$0xff]
        %v925 = vld [vmem:[#allocation3 + $0x70] sm:$0xff]
        %v926 = vld [vmem:[#allocation3 + $0x78] sm:$0xff]
        %v927 = vld [vmem:[#allocation3 + $0x80] sm:$0xff]
        %v928 = vld [vmem:[#allocation3 + $0x88] sm:$0xff]
        %v929 = vld [vmem:[#allocation3 + $0x90] sm:$0xff]
        %v930 = vld [vmem:[#allocation3 + $0x98] sm:$0xff]
        %v931 = vld [vmem:[#allocation3 + $0xa0] sm:$0xff]
        %v932 = vld [vmem:[#allocation3 + $0xa8] sm:$0xff]
        %v933 = vld [vmem:[#allocation3 + $0xb0] sm:$0xff]
        %v934 = vld [vmem:[#allocation3 + $0xb8] sm:$0xff]
        %v935 = vld [vmem:[#allocation3 + $0xc0] sm:$0xff]
        %v936 = vld [vmem:[#allocation3 + $0xc8] sm:$0xff]
        %v937 = vld [vmem:[#allocation3 + $0xd0] sm:$0xff]
        %v938 = vld [vmem:[#allocation3 + $0xd8] sm:$0xff]
        %v939 = vld [vmem:[#allocation3 + $0xe0] sm:$0xff]
        %v940 = vld [vmem:[#allocation3 + $0xe8] sm:$0xff]
        %v941 = vld [vmem:[#allocation3 + $0xf0] sm:$0xff]
        %v942 = vld [vmem:[#allocation3 + $0xf8] sm:$0xff]
        %v943 = vmul.f32 %v848, %v911
        %v944 = vmul.f32 %v850, %v912
        %v945 = vmul.f32 %v852, %v913
        %v946 = vmul.f32 %v854, %v914
        %v947 = vmul.f32 %v856, %v915
        %v948 = vmul.f32 %v858, %v916
        %v949 = vmul.f32 %v860, %v917
        %v950 = vmul.f32 %v862, %v918
        %v951 = vmul.f32 %v864, %v919
        %v952 = vmul.f32 %v866, %v920
        %v953 = vmul.f32 %v868, %v921
        %v954 = vmul.f32 %v870, %v922
        %v955 = vmul.f32 %v872, %v923
        %v956 = vmul.f32 %v874, %v924
        %v957 = vmul.f32 %v876, %v925
        %v958 = vmul.f32 %v878, %v926
        %v959 = vmul.f32 %v880, %v927
        %v960 = vmul.f32 %v882, %v928
        %v961 = vmul.f32 %v884, %v929
        %v962 = vmul.f32 %v886, %v930
        %v963 = vmul.f32 %v888, %v931
        %v964 = vmul.f32 %v890, %v932
        %v965 = vmul.f32 %v892, %v933
        %v966 = vmul.f32 %v894, %v934
        %v967 = vmul.f32 %v896, %v935
        %v968 = vmul.f32 %v898, %v936
        %v969 = vmul.f32 %v900, %v937
        %v970 = vmul.f32 %v902, %v938
        %v971 = vmul.f32 %v904, %v939
        %v972 = vmul.f32 %v906, %v940
        %v973 = vmul.f32 %v908, %v941
        %v974 = vmul.f32 %v910, %v942
        %976 = vset.pattern.permute.xlu0 0
        %977 = vperm.xlu0 %976, %v783
        %v978 = vpop.permute.xlu0 %977
        %981 = vset.pattern.permute.xlu0 0
        %982 = vperm.xlu0 %981, %v784
        %v983 = vpop.permute.xlu0 %982
        %986 = vset.pattern.permute.xlu0 0
        %987 = vperm.xlu0 %986, %v785
        %v988 = vpop.permute.xlu0 %987
        %991 = vset.pattern.permute.xlu0 0
        %992 = vperm.xlu0 %991, %v786
        %v993 = vpop.permute.xlu0 %992
        %996 = vset.pattern.permute.xlu0 0
        %997 = vperm.xlu0 %996, %v787
        %v998 = vpop.permute.xlu0 %997
        %1001 = vset.pattern.permute.xlu0 0
        %1002 = vperm.xlu0 %1001, %v788
        %v1003 = vpop.permute.xlu0 %1002
        %1006 = vset.pattern.permute.xlu0 0
        %1007 = vperm.xlu0 %1006, %v789
        %v1008 = vpop.permute.xlu0 %1007
        %1011 = vset.pattern.permute.xlu0 0
        %1012 = vperm.xlu0 %1011, %v790
        %v1013 = vpop.permute.xlu0 %1012
        %1016 = vset.pattern.permute.xlu0 0
        %1017 = vperm.xlu0 %1016, %v791
        %v1018 = vpop.permute.xlu0 %1017
        %1021 = vset.pattern.permute.xlu0 0
        %1022 = vperm.xlu0 %1021, %v792
        %v1023 = vpop.permute.xlu0 %1022
        %1026 = vset.pattern.permute.xlu0 0
        %1027 = vperm.xlu0 %1026, %v793
        %v1028 = vpop.permute.xlu0 %1027
        %1031 = vset.pattern.permute.xlu0 0
        %1032 = vperm.xlu0 %1031, %v794
        %v1033 = vpop.permute.xlu0 %1032
        %1036 = vset.pattern.permute.xlu0 0
        %1037 = vperm.xlu0 %1036, %v795
        %v1038 = vpop.permute.xlu0 %1037
        %1041 = vset.pattern.permute.xlu0 0
        %1042 = vperm.xlu0 %1041, %v796
        %v1043 = vpop.permute.xlu0 %1042
        %1046 = vset.pattern.permute.xlu0 0
        %1047 = vperm.xlu0 %1046, %v797
        %v1048 = vpop.permute.xlu0 %1047
        %1051 = vset.pattern.permute.xlu0 0
        %1052 = vperm.xlu0 %1051, %v798
        %v1053 = vpop.permute.xlu0 %1052
        %1056 = vset.pattern.permute.xlu0 0
        %1057 = vperm.xlu0 %1056, %v799
        %v1058 = vpop.permute.xlu0 %1057
        %1061 = vset.pattern.permute.xlu0 0
        %1062 = vperm.xlu0 %1061, %v800
        %v1063 = vpop.permute.xlu0 %1062
        %1066 = vset.pattern.permute.xlu0 0
        %1067 = vperm.xlu0 %1066, %v801
        %v1068 = vpop.permute.xlu0 %1067
        %1071 = vset.pattern.permute.xlu0 0
        %1072 = vperm.xlu0 %1071, %v802
        %v1073 = vpop.permute.xlu0 %1072
        %1076 = vset.pattern.permute.xlu0 0
        %1077 = vperm.xlu0 %1076, %v803
        %v1078 = vpop.permute.xlu0 %1077
        %1081 = vset.pattern.permute.xlu0 0
        %1082 = vperm.xlu0 %1081, %v804
        %v1083 = vpop.permute.xlu0 %1082
        %1086 = vset.pattern.permute.xlu0 0
        %1087 = vperm.xlu0 %1086, %v805
        %v1088 = vpop.permute.xlu0 %1087
        %1091 = vset.pattern.permute.xlu0 0
        %1092 = vperm.xlu0 %1091, %v806
        %v1093 = vpop.permute.xlu0 %1092
        %1096 = vset.pattern.permute.xlu0 0
        %1097 = vperm.xlu0 %1096, %v807
        %v1098 = vpop.permute.xlu0 %1097
        %1101 = vset.pattern.permute.xlu0 0
        %1102 = vperm.xlu0 %1101, %v808
        %v1103 = vpop.permute.xlu0 %1102
        %1106 = vset.pattern.permute.xlu0 0
        %1107 = vperm.xlu0 %1106, %v809
        %v1108 = vpop.permute.xlu0 %1107
        %1111 = vset.pattern.permute.xlu0 0
        %1112 = vperm.xlu0 %1111, %v810
        %v1113 = vpop.permute.xlu0 %1112
        %1116 = vset.pattern.permute.xlu0 0
        %1117 = vperm.xlu0 %1116, %v811
        %v1118 = vpop.permute.xlu0 %1117
        %1121 = vset.pattern.permute.xlu0 0
        %1122 = vperm.xlu0 %1121, %v812
        %v1123 = vpop.permute.xlu0 %1122
        %1126 = vset.pattern.permute.xlu0 0
        %1127 = vperm.xlu0 %1126, %v813
        %v1128 = vpop.permute.xlu0 %1127
        %1131 = vset.pattern.permute.xlu0 0
        %1132 = vperm.xlu0 %1131, %v814
        %v1133 = vpop.permute.xlu0 %1132
        %v1135 = vsub.f32 %v465, %v978
        %v1136 = vsub.f32 %v467, %v978
        %v1137 = vsub.f32 %v471, %v983
        %v1138 = vsub.f32 %v473, %v983
        %v1139 = vsub.f32 %v477, %v988
        %v1140 = vsub.f32 %v479, %v988
        %v1141 = vsub.f32 %v483, %v993
        %v1142 = vsub.f32 %v485, %v993
        %v1143 = vsub.f32 %v489, %v998
        %v1144 = vsub.f32 %v491, %v998
        %v1145 = vsub.f32 %v495, %v1003
        %v1146 = vsub.f32 %v497, %v1003
        %v1147 = vsub.f32 %v501, %v1008
        %v1148 = vsub.f32 %v503, %v1008
        %v1149 = vsub.f32 %v507, %v1013
        %v1150 = vsub.f32 %v509, %v1013
        %v1151 = vsub.f32 %v513, %v1018
        %v1152 = vsub.f32 %v515, %v1018
        %v1153 = vsub.f32 %v519, %v1023
        %v1154 = vsub.f32 %v521, %v1023
        %v1155 = vsub.f32 %v525, %v1028
        %v1156 = vsub.f32 %v527, %v1028
        %v1157 = vsub.f32 %v531, %v1033
        %v1158 = vsub.f32 %v533, %v1033
        %v1159 = vsub.f32 %v537, %v1038
        %v1160 = vsub.f32 %v539, %v1038
        %v1161 = vsub.f32 %v543, %v1043
        %v1162 = vsub.f32 %v545, %v1043
        %v1163 = vsub.f32 %v549, %v1048
        %v1164 = vsub.f32 %v551, %v1048
        %v1165 = vsub.f32 %v555, %v1053
        %v1166 = vsub.f32 %v557, %v1053
        %v1167 = vsub.f32 %v561, %v1058
        %v1168 = vsub.f32 %v563, %v1058
        %v1169 = vsub.f32 %v567, %v1063
        %v1170 = vsub.f32 %v569, %v1063
        %v1171 = vsub.f32 %v573, %v1068
        %v1172 = vsub.f32 %v575, %v1068
        %v1173 = vsub.f32 %v579, %v1073
        %v1174 = vsub.f32 %v581, %v1073
        %v1175 = vsub.f32 %v585, %v1078
        %v1176 = vsub.f32 %v587, %v1078
        %v1177 = vsub.f32 %v591, %v1083
        %v1178 = vsub.f32 %v593, %v1083
        %v1179 = vsub.f32 %v597, %v1088
        %v1180 = vsub.f32 %v599, %v1088
        %v1181 = vsub.f32 %v603, %v1093
        %v1182 = vsub.f32 %v605, %v1093
        %v1183 = vsub.f32 %v609, %v1098
        %v1184 = vsub.f32 %v611, %v1098
        %v1185 = vsub.f32 %v615, %v1103
        %v1186 = vsub.f32 %v617, %v1103
        %v1187 = vsub.f32 %v621, %v1108
        %v1188 = vsub.f32 %v623, %v1108
        %v1189 = vsub.f32 %v627, %v1113
        %v1190 = vsub.f32 %v629, %v1113
        %v1191 = vsub.f32 %v633, %v1118
        %v1192 = vsub.f32 %v635, %v1118
        %v1193 = vsub.f32 %v639, %v1123
        %v1194 = vsub.f32 %v641, %v1123
        %v1195 = vsub.f32 %v645, %v1128
        %v1196 = vsub.f32 %v647, %v1128
        %v1197 = vsub.f32 %v651, %v1133
        %v1198 = vsub.f32 %v653, %v1133
        %v1199 = vmul.f32 %v1135, 1.442695
        %v1200 = vpow.pop %v1199
        %v1201 = vmul.f32 %v1136, 1.442695
        %v1202 = vpow.pop %v1201
        %v1203 = vmul.f32 %v1137, 1.442695
        %v1204 = vpow.pop %v1203
        %v1205 = vmul.f32 %v1138, 1.442695
        %v1206 = vpow.pop %v1205
        %v1207 = vmul.f32 %v1139, 1.442695
        %v1208 = vpow.pop %v1207
        %v1209 = vmul.f32 %v1140, 1.442695
        %v1210 = vpow.pop %v1209
        %v1211 = vmul.f32 %v1141, 1.442695
        %v1212 = vpow.pop %v1211
        %v1213 = vmul.f32 %v1142, 1.442695
        %v1214 = vpow.pop %v1213
        %v1215 = vmul.f32 %v1143, 1.442695
        %v1216 = vpow.pop %v1215
        %v1217 = vmul.f32 %v1144, 1.442695
        %v1218 = vpow.pop %v1217
        %v1219 = vmul.f32 %v1145, 1.442695
        %v1220 = vpow.pop %v1219
        %v1221 = vmul.f32 %v1146, 1.442695
        %v1222 = vpow.pop %v1221
        %v1223 = vmul.f32 %v1147, 1.442695
        %v1224 = vpow.pop %v1223
        %v1225 = vmul.f32 %v1148, 1.442695
        %v1226 = vpow.pop %v1225
        %v1227 = vmul.f32 %v1149, 1.442695
        %v1228 = vpow.pop %v1227
        %v1229 = vmul.f32 %v1150, 1.442695
        %v1230 = vpow.pop %v1229
        %v1231 = vmul.f32 %v1151, 1.442695
        %v1232 = vpow.pop %v1231
        %v1233 = vmul.f32 %v1152, 1.442695
        %v1234 = vpow.pop %v1233
        %v1235 = vmul.f32 %v1153, 1.442695
        %v1236 = vpow.pop %v1235
        %v1237 = vmul.f32 %v1154, 1.442695
        %v1238 = vpow.pop %v1237
        %v1239 = vmul.f32 %v1155, 1.442695
        %v1240 = vpow.pop %v1239
        %v1241 = vmul.f32 %v1156, 1.442695
        %v1242 = vpow.pop %v1241
        %v1243 = vmul.f32 %v1157, 1.442695
        %v1244 = vpow.pop %v1243
        %v1245 = vmul.f32 %v1158, 1.442695
        %v1246 = vpow.pop %v1245
        %v1247 = vmul.f32 %v1159, 1.442695
        %v1248 = vpow.pop %v1247
        %v1249 = vmul.f32 %v1160, 1.442695
        %v1250 = vpow.pop %v1249
        %v1251 = vmul.f32 %v1161, 1.442695
        %v1252 = vpow.pop %v1251
        %v1253 = vmul.f32 %v1162, 1.442695
        %v1254 = vpow.pop %v1253
        %v1255 = vmul.f32 %v1163, 1.442695
        %v1256 = vpow.pop %v1255
        %v1257 = vmul.f32 %v1164, 1.442695
        %v1258 = vpow.pop %v1257
        %v1259 = vmul.f32 %v1165, 1.442695
        %v1260 = vpow.pop %v1259
        %v1261 = vmul.f32 %v1166, 1.442695
        %v1262 = vpow.pop %v1261
        %v1263 = vmul.f32 %v1167, 1.442695
        %v1264 = vpow.pop %v1263
        %v1265 = vmul.f32 %v1168, 1.442695
        %v1266 = vpow.pop %v1265
        %v1267 = vmul.f32 %v1169, 1.442695
        %v1268 = vpow.pop %v1267
        %v1269 = vmul.f32 %v1170, 1.442695
        %v1270 = vpow.pop %v1269
        %v1271 = vmul.f32 %v1171, 1.442695
        %v1272 = vpow.pop %v1271
        %v1273 = vmul.f32 %v1172, 1.442695
        %v1274 = vpow.pop %v1273
        %v1275 = vmul.f32 %v1173, 1.442695
        %v1276 = vpow.pop %v1275
        %v1277 = vmul.f32 %v1174, 1.442695
        %v1278 = vpow.pop %v1277
        %v1279 = vmul.f32 %v1175, 1.442695
        %v1280 = vpow.pop %v1279
        %v1281 = vmul.f32 %v1176, 1.442695
        %v1282 = vpow.pop %v1281
        %v1283 = vmul.f32 %v1177, 1.442695
        %v1284 = vpow.pop %v1283
        %v1285 = vmul.f32 %v1178, 1.442695
        %v1286 = vpow.pop %v1285
        %v1287 = vmul.f32 %v1179, 1.442695
        %v1288 = vpow.pop %v1287
        %v1289 = vmul.f32 %v1180, 1.442695
        %v1290 = vpow.pop %v1289
        %v1291 = vmul.f32 %v1181, 1.442695
        %v1292 = vpow.pop %v1291
        %v1293 = vmul.f32 %v1182, 1.442695
        %v1294 = vpow.pop %v1293
        %v1295 = vmul.f32 %v1183, 1.442695
        %v1296 = vpow.pop %v1295
        %v1297 = vmul.f32 %v1184, 1.442695
        %v1298 = vpow.pop %v1297
        %v1299 = vmul.f32 %v1185, 1.442695
        %v1300 = vpow.pop %v1299
        %v1301 = vmul.f32 %v1186, 1.442695
        %v1302 = vpow.pop %v1301
        %v1303 = vmul.f32 %v1187, 1.442695
        %v1304 = vpow.pop %v1303
        %v1305 = vmul.f32 %v1188, 1.442695
        %v1306 = vpow.pop %v1305
        %v1307 = vmul.f32 %v1189, 1.442695
        %v1308 = vpow.pop %v1307
        %v1309 = vmul.f32 %v1190, 1.442695
        %v1310 = vpow.pop %v1309
        %v1311 = vmul.f32 %v1191, 1.442695
        %v1312 = vpow.pop %v1311
        %v1313 = vmul.f32 %v1192, 1.442695
        %v1314 = vpow.pop %v1313
        %v1315 = vmul.f32 %v1193, 1.442695
        %v1316 = vpow.pop %v1315
        %v1317 = vmul.f32 %v1194, 1.442695
        %v1318 = vpow.pop %v1317
        %v1319 = vmul.f32 %v1195, 1.442695
        %v1320 = vpow.pop %v1319
        %v1321 = vmul.f32 %v1196, 1.442695
        %v1322 = vpow.pop %v1321
        %v1323 = vmul.f32 %v1197, 1.442695
        %v1324 = vpow.pop %v1323
        %v1325 = vmul.f32 %v1198, 1.442695
        %v1326 = vpow.pop %v1325
        %v1327 = vadd.f32 %v1200, %v1202
        %1328 = vadd.xlane.f32.xlu0 %v1327
        %v1329 = vpop.xlane.xlu0 %1328
        %v1330 = vadd.f32 %v1204, %v1206
        %1331 = vadd.xlane.f32.xlu0 %v1330
        %v1332 = vpop.xlane.xlu0 %1331
        %v1333 = vadd.f32 %v1208, %v1210
        %1334 = vadd.xlane.f32.xlu0 %v1333
        %v1335 = vpop.xlane.xlu0 %1334
        %v1336 = vadd.f32 %v1212, %v1214
        %1337 = vadd.xlane.f32.xlu0 %v1336
        %v1338 = vpop.xlane.xlu0 %1337
        %v1339 = vadd.f32 %v1216, %v1218
        %1340 = vadd.xlane.f32.xlu0 %v1339
        %v1341 = vpop.xlane.xlu0 %1340
        %v1342 = vadd.f32 %v1220, %v1222
        %1343 = vadd.xlane.f32.xlu0 %v1342
        %v1344 = vpop.xlane.xlu0 %1343
        %v1345 = vadd.f32 %v1224, %v1226
        %1346 = vadd.xlane.f32.xlu0 %v1345
        %v1347 = vpop.xlane.xlu0 %1346
        %v1348 = vadd.f32 %v1228, %v1230
        %1349 = vadd.xlane.f32.xlu0 %v1348
        %v1350 = vpop.xlane.xlu0 %1349
        %v1351 = vadd.f32 %v1232, %v1234
        %1352 = vadd.xlane.f32.xlu0 %v1351
        %v1353 = vpop.xlane.xlu0 %1352
        %v1354 = vadd.f32 %v1236, %v1238
        %1355 = vadd.xlane.f32.xlu0 %v1354
        %v1356 = vpop.xlane.xlu0 %1355
        %v1357 = vadd.f32 %v1240, %v1242
        %1358 = vadd.xlane.f32.xlu0 %v1357
        %v1359 = vpop.xlane.xlu0 %1358
        %v1360 = vadd.f32 %v1244, %v1246
        %1361 = vadd.xlane.f32.xlu0 %v1360
        %v1362 = vpop.xlane.xlu0 %1361
        %v1363 = vadd.f32 %v1248, %v1250
        %1364 = vadd.xlane.f32.xlu0 %v1363
        %v1365 = vpop.xlane.xlu0 %1364
        %v1366 = vadd.f32 %v1252, %v1254
        %1367 = vadd.xlane.f32.xlu0 %v1366
        %v1368 = vpop.xlane.xlu0 %1367
        %v1369 = vadd.f32 %v1256, %v1258
        %1370 = vadd.xlane.f32.xlu0 %v1369
        %v1371 = vpop.xlane.xlu0 %1370
        %v1372 = vadd.f32 %v1260, %v1262
        %1373 = vadd.xlane.f32.xlu0 %v1372
        %v1374 = vpop.xlane.xlu0 %1373
        %v1375 = vadd.f32 %v1264, %v1266
        %1376 = vadd.xlane.f32.xlu0 %v1375
        %v1377 = vpop.xlane.xlu0 %1376
        %v1378 = vadd.f32 %v1268, %v1270
        %1379 = vadd.xlane.f32.xlu0 %v1378
        %v1380 = vpop.xlane.xlu0 %1379
        %v1381 = vadd.f32 %v1272, %v1274
        %1382 = vadd.xlane.f32.xlu0 %v1381
        %v1383 = vpop.xlane.xlu0 %1382
        %v1384 = vadd.f32 %v1276, %v1278
        %1385 = vadd.xlane.f32.xlu0 %v1384
        %v1386 = vpop.xlane.xlu0 %1385
        %v1387 = vadd.f32 %v1280, %v1282
        %1388 = vadd.xlane.f32.xlu0 %v1387
        %v1389 = vpop.xlane.xlu0 %1388
        %v1390 = vadd.f32 %v1284, %v1286
        %1391 = vadd.xlane.f32.xlu0 %v1390
        %v1392 = vpop.xlane.xlu0 %1391
        %v1393 = vadd.f32 %v1288, %v1290
        %1394 = vadd.xlane.f32.xlu0 %v1393
        %v1395 = vpop.xlane.xlu0 %1394
        %v1396 = vadd.f32 %v1292, %v1294
        %1397 = vadd.xlane.f32.xlu0 %v1396
        %v1398 = vpop.xlane.xlu0 %1397
        %v1399 = vadd.f32 %v1296, %v1298
        %1400 = vadd.xlane.f32.xlu0 %v1399
        %v1401 = vpop.xlane.xlu0 %1400
        %v1402 = vadd.f32 %v1300, %v1302
        %1403 = vadd.xlane.f32.xlu0 %v1402
        %v1404 = vpop.xlane.xlu0 %1403
        %v1405 = vadd.f32 %v1304, %v1306
        %1406 = vadd.xlane.f32.xlu0 %v1405
        %v1407 = vpop.xlane.xlu0 %1406
        %v1408 = vadd.f32 %v1308, %v1310
        %1409 = vadd.xlane.f32.xlu0 %v1408
        %v1410 = vpop.xlane.xlu0 %1409
        %v1411 = vadd.f32 %v1312, %v1314
        %1412 = vadd.xlane.f32.xlu0 %v1411
        %v1413 = vpop.xlane.xlu0 %1412
        %v1414 = vadd.f32 %v1316, %v1318
        %1415 = vadd.xlane.f32.xlu0 %v1414
        %v1416 = vpop.xlane.xlu0 %1415
        %v1417 = vadd.f32 %v1320, %v1322
        %1418 = vadd.xlane.f32.xlu0 %v1417
        %v1419 = vpop.xlane.xlu0 %1418
        %v1420 = vadd.f32 %v1324, %v1326
        %1421 = vadd.xlane.f32.xlu0 %v1420
        %v1422 = vpop.xlane.xlu0 %1421
        %v1423 = vadd.f32 %v943, %v1329
        %v1424 = vadd.f32 %v944, %v1332
        %v1425 = vadd.f32 %v945, %v1335
        %v1426 = vadd.f32 %v946, %v1338
        %v1427 = vadd.f32 %v947, %v1341
        %v1428 = vadd.f32 %v948, %v1344
        %v1429 = vadd.f32 %v949, %v1347
        %v1430 = vadd.f32 %v950, %v1350
        %v1431 = vadd.f32 %v951, %v1353
        %v1432 = vadd.f32 %v952, %v1356
        %v1433 = vadd.f32 %v953, %v1359
        %v1434 = vadd.f32 %v954, %v1362
        %v1435 = vadd.f32 %v955, %v1365
        %v1436 = vadd.f32 %v956, %v1368
        %v1437 = vadd.f32 %v957, %v1371
        %v1438 = vadd.f32 %v958, %v1374
        %v1439 = vadd.f32 %v959, %v1377
        %v1440 = vadd.f32 %v960, %v1380
        %v1441 = vadd.f32 %v961, %v1383
        %v1442 = vadd.f32 %v962, %v1386
        %v1443 = vadd.f32 %v963, %v1389
        %v1444 = vadd.f32 %v964, %v1392
        %v1445 = vadd.f32 %v965, %v1395
        %v1446 = vadd.f32 %v966, %v1398
        %v1447 = vadd.f32 %v967, %v1401
        %v1448 = vadd.f32 %v968, %v1404
        %v1449 = vadd.f32 %v969, %v1407
        %v1450 = vadd.f32 %v970, %v1410
        %v1451 = vadd.f32 %v971, %v1413
        %v1452 = vadd.f32 %v972, %v1416
        %v1453 = vadd.f32 %v973, %v1419
        %v1454 = vadd.f32 %v974, %v1422
        %vm1455 = vcmask 7168
        %1456 = vst.msk [vmem:[#allocation3] sm:$0xff] %vm1455, %v1423
        %1457 = vst.msk [vmem:[#allocation3 + $0x8] sm:$0xff] %vm1455, %v1424
        %1458 = vst.msk [vmem:[#allocation3 + $0x10] sm:$0xff] %vm1455, %v1425
        %1459 = vst.msk [vmem:[#allocation3 + $0x18] sm:$0xff] %vm1455, %v1426
        %1460 = vst.msk [vmem:[#allocation3 + $0x20] sm:$0xff] %vm1455, %v1427
        %1461 = vst.msk [vmem:[#allocation3 + $0x28] sm:$0xff] %vm1455, %v1428
        %1462 = vst.msk [vmem:[#allocation3 + $0x30] sm:$0xff] %vm1455, %v1429
        %1463 = vst.msk [vmem:[#allocation3 + $0x38] sm:$0xff] %vm1455, %v1430
        %1464 = vst.msk [vmem:[#allocation3 + $0x40] sm:$0xff] %vm1455, %v1431
        %1465 = vst.msk [vmem:[#allocation3 + $0x48] sm:$0xff] %vm1455, %v1432
        %1466 = vst.msk [vmem:[#allocation3 + $0x50] sm:$0xff] %vm1455, %v1433
        %1467 = vst.msk [vmem:[#allocation3 + $0x58] sm:$0xff] %vm1455, %v1434
        %1468 = vst.msk [vmem:[#allocation3 + $0x60] sm:$0xff] %vm1455, %v1435
        %1469 = vst.msk [vmem:[#allocation3 + $0x68] sm:$0xff] %vm1455, %v1436
        %1470 = vst.msk [vmem:[#allocation3 + $0x70] sm:$0xff] %vm1455, %v1437
        %1471 = vst.msk [vmem:[#allocation3 + $0x78] sm:$0xff] %vm1455, %v1438
        %1472 = vst.msk [vmem:[#allocation3 + $0x80] sm:$0xff] %vm1455, %v1439
        %1473 = vst.msk [vmem:[#allocation3 + $0x88] sm:$0xff] %vm1455, %v1440
        %1474 = vst.msk [vmem:[#allocation3 + $0x90] sm:$0xff] %vm1455, %v1441
        %1475 = vst.msk [vmem:[#allocation3 + $0x98] sm:$0xff] %vm1455, %v1442
        %1476 = vst.msk [vmem:[#allocation3 + $0xa0] sm:$0xff] %vm1455, %v1443
        %1477 = vst.msk [vmem:[#allocation3 + $0xa8] sm:$0xff] %vm1455, %v1444
        %1478 = vst.msk [vmem:[#allocation3 + $0xb0] sm:$0xff] %vm1455, %v1445
        %1479 = vst.msk [vmem:[#allocation3 + $0xb8] sm:$0xff] %vm1455, %v1446
        %1480 = vst.msk [vmem:[#allocation3 + $0xc0] sm:$0xff] %vm1455, %v1447
        %1481 = vst.msk [vmem:[#allocation3 + $0xc8] sm:$0xff] %vm1455, %v1448
        %1482 = vst.msk [vmem:[#allocation3 + $0xd0] sm:$0xff] %vm1455, %v1449
        %1483 = vst.msk [vmem:[#allocation3 + $0xd8] sm:$0xff] %vm1455, %v1450
        %1484 = vst.msk [vmem:[#allocation3 + $0xe0] sm:$0xff] %vm1455, %v1451
        %1485 = vst.msk [vmem:[#allocation3 + $0xe8] sm:$0xff] %vm1455, %v1452
        %1486 = vst.msk [vmem:[#allocation3 + $0xf0] sm:$0xff] %vm1455, %v1453
        %1487 = vst.msk [vmem:[#allocation3 + $0xf8] sm:$0xff] %vm1455, %v1454
        %1488 = vst.msk [vmem:[#allocation2] sm:$0xff] %vm1455, %v783
        %1489 = vst.msk [vmem:[#allocation2 + $0x8] sm:$0xff] %vm1455, %v784
        %1490 = vst.msk [vmem:[#allocation2 + $0x10] sm:$0xff] %vm1455, %v785
        %1491 = vst.msk [vmem:[#allocation2 + $0x18] sm:$0xff] %vm1455, %v786
        %1492 = vst.msk [vmem:[#allocation2 + $0x20] sm:$0xff] %vm1455, %v787
        %1493 = vst.msk [vmem:[#allocation2 + $0x28] sm:$0xff] %vm1455, %v788
        %1494 = vst.msk [vmem:[#allocation2 + $0x30] sm:$0xff] %vm1455, %v789
        %1495 = vst.msk [vmem:[#allocation2 + $0x38] sm:$0xff] %vm1455, %v790
        %1496 = vst.msk [vmem:[#allocation2 + $0x40] sm:$0xff] %vm1455, %v791
        %1497 = vst.msk [vmem:[#allocation2 + $0x48] sm:$0xff] %vm1455, %v792
        %1498 = vst.msk [vmem:[#allocation2 + $0x50] sm:$0xff] %vm1455, %v793
        %1499 = vst.msk [vmem:[#allocation2 + $0x58] sm:$0xff] %vm1455, %v794
        %1500 = vst.msk [vmem:[#allocation2 + $0x60] sm:$0xff] %vm1455, %v795
        %1501 = vst.msk [vmem:[#allocation2 + $0x68] sm:$0xff] %vm1455, %v796
        %1502 = vst.msk [vmem:[#allocation2 + $0x70] sm:$0xff] %vm1455, %v797
        %1503 = vst.msk [vmem:[#allocation2 + $0x78] sm:$0xff] %vm1455, %v798
        %1504 = vst.msk [vmem:[#allocation2 + $0x80] sm:$0xff] %vm1455, %v799
        %1505 = vst.msk [vmem:[#allocation2 + $0x88] sm:$0xff] %vm1455, %v800
        %1506 = vst.msk [vmem:[#allocation2 + $0x90] sm:$0xff] %vm1455, %v801
        %1507 = vst.msk [vmem:[#allocation2 + $0x98] sm:$0xff] %vm1455, %v802
        %1508 = vst.msk [vmem:[#allocation2 + $0xa0] sm:$0xff] %vm1455, %v803
        %1509 = vst.msk [vmem:[#allocation2 + $0xa8] sm:$0xff] %vm1455, %v804
        %1510 = vst.msk [vmem:[#allocation2 + $0xb0] sm:$0xff] %vm1455, %v805
        %1511 = vst.msk [vmem:[#allocation2 + $0xb8] sm:$0xff] %vm1455, %v806
        %1512 = vst.msk [vmem:[#allocation2 + $0xc0] sm:$0xff] %vm1455, %v807
        %1513 = vst.msk [vmem:[#allocation2 + $0xc8] sm:$0xff] %vm1455, %v808
        %1514 = vst.msk [vmem:[#allocation2 + $0xd0] sm:$0xff] %vm1455, %v809
        %1515 = vst.msk [vmem:[#allocation2 + $0xd8] sm:$0xff] %vm1455, %v810
        %1516 = vst.msk [vmem:[#allocation2 + $0xe0] sm:$0xff] %vm1455, %v811
        %1517 = vst.msk [vmem:[#allocation2 + $0xe8] sm:$0xff] %vm1455, %v812
        %1518 = vst.msk [vmem:[#allocation2 + $0xf0] sm:$0xff] %vm1455, %v813
        %1519 = vst.msk [vmem:[#allocation2 + $0xf8] sm:$0xff] %vm1455, %v814
        %p1520 = scmp.eq.s32.totalorder %s25, 1
        // Predicated region
        $region45: #{tpu_custom_call.1} parent=31 // pred_check
          %p1521 = pneg %p1520
        $region46: #{tpu_custom_call.1} parent=31 // pred_check_branch
          %1523 = sbr.rel (%p1521) target = $region48
        $region47: #{tpu_custom_call.1} parent=31 // pred_region
          %v1524 = vld [vmem:[#allocation2] sm:$0xff]
          %v1525 = vld [vmem:[#allocation2 + $0x8] sm:$0xff]
          %v1526 = vld [vmem:[#allocation2 + $0x10] sm:$0xff]
          %v1527 = vld [vmem:[#allocation2 + $0x18] sm:$0xff]
          %v1528 = vld [vmem:[#allocation2 + $0x20] sm:$0xff]
          %v1529 = vld [vmem:[#allocation2 + $0x28] sm:$0xff]
          %v1530 = vld [vmem:[#allocation2 + $0x30] sm:$0xff]
          %v1531 = vld [vmem:[#allocation2 + $0x38] sm:$0xff]
          %v1532 = vld [vmem:[#allocation2 + $0x40] sm:$0xff]
          %v1533 = vld [vmem:[#allocation2 + $0x48] sm:$0xff]
          %v1534 = vld [vmem:[#allocation2 + $0x50] sm:$0xff]
          %v1535 = vld [vmem:[#allocation2 + $0x58] sm:$0xff]
          %v1536 = vld [vmem:[#allocation2 + $0x60] sm:$0xff]
          %v1537 = vld [vmem:[#allocation2 + $0x68] sm:$0xff]
          %v1538 = vld [vmem:[#allocation2 + $0x70] sm:$0xff]
          %v1539 = vld [vmem:[#allocation2 + $0x78] sm:$0xff]
          %v1540 = vld [vmem:[#allocation2 + $0x80] sm:$0xff]
          %v1541 = vld [vmem:[#allocation2 + $0x88] sm:$0xff]
          %v1542 = vld [vmem:[#allocation2 + $0x90] sm:$0xff]
          %v1543 = vld [vmem:[#allocation2 + $0x98] sm:$0xff]
          %v1544 = vld [vmem:[#allocation2 + $0xa0] sm:$0xff]
          %v1545 = vld [vmem:[#allocation2 + $0xa8] sm:$0xff]
          %v1546 = vld [vmem:[#allocation2 + $0xb0] sm:$0xff]
          %v1547 = vld [vmem:[#allocation2 + $0xb8] sm:$0xff]
          %v1548 = vld [vmem:[#allocation2 + $0xc0] sm:$0xff]
          %v1549 = vld [vmem:[#allocation2 + $0xc8] sm:$0xff]
          %v1550 = vld [vmem:[#allocation2 + $0xd0] sm:$0xff]
          %v1551 = vld [vmem:[#allocation2 + $0xd8] sm:$0xff]
          %v1552 = vld [vmem:[#allocation2 + $0xe0] sm:$0xff]
          %v1553 = vld [vmem:[#allocation2 + $0xe8] sm:$0xff]
          %v1554 = vld [vmem:[#allocation2 + $0xf0] sm:$0xff]
          %v1555 = vld [vmem:[#allocation2 + $0xf8] sm:$0xff]
          %v1556 = vld [vmem:[#allocation3] sm:$0xff]
          %v1557 = vld [vmem:[#allocation3 + $0x8] sm:$0xff]
          %v1558 = vld [vmem:[#allocation3 + $0x10] sm:$0xff]
          %v1559 = vld [vmem:[#allocation3 + $0x18] sm:$0xff]
          %v1560 = vld [vmem:[#allocation3 + $0x20] sm:$0xff]
          %v1561 = vld [vmem:[#allocation3 + $0x28] sm:$0xff]
          %v1562 = vld [vmem:[#allocation3 + $0x30] sm:$0xff]
          %v1563 = vld [vmem:[#allocation3 + $0x38] sm:$0xff]
          %v1564 = vld [vmem:[#allocation3 + $0x40] sm:$0xff]
          %v1565 = vld [vmem:[#allocation3 + $0x48] sm:$0xff]
          %v1566 = vld [vmem:[#allocation3 + $0x50] sm:$0xff]
          %v1567 = vld [vmem:[#allocation3 + $0x58] sm:$0xff]
          %v1568 = vld [vmem:[#allocation3 + $0x60] sm:$0xff]
          %v1569 = vld [vmem:[#allocation3 + $0x68] sm:$0xff]
          %v1570 = vld [vmem:[#allocation3 + $0x70] sm:$0xff]
          %v1571 = vld [vmem:[#allocation3 + $0x78] sm:$0xff]
          %v1572 = vld [vmem:[#allocation3 + $0x80] sm:$0xff]
          %v1573 = vld [vmem:[#allocation3 + $0x88] sm:$0xff]
          %v1574 = vld [vmem:[#allocation3 + $0x90] sm:$0xff]
          %v1575 = vld [vmem:[#allocation3 + $0x98] sm:$0xff]
          %v1576 = vld [vmem:[#allocation3 + $0xa0] sm:$0xff]
          %v1577 = vld [vmem:[#allocation3 + $0xa8] sm:$0xff]
          %v1578 = vld [vmem:[#allocation3 + $0xb0] sm:$0xff]
          %v1579 = vld [vmem:[#allocation3 + $0xb8] sm:$0xff]
          %v1580 = vld [vmem:[#allocation3 + $0xc0] sm:$0xff]
          %v1581 = vld [vmem:[#allocation3 + $0xc8] sm:$0xff]
          %v1582 = vld [vmem:[#allocation3 + $0xd0] sm:$0xff]
          %v1583 = vld [vmem:[#allocation3 + $0xd8] sm:$0xff]
          %v1584 = vld [vmem:[#allocation3 + $0xe0] sm:$0xff]
          %v1585 = vld [vmem:[#allocation3 + $0xe8] sm:$0xff]
          %v1586 = vld [vmem:[#allocation3 + $0xf0] sm:$0xff]
          %v1587 = vld [vmem:[#allocation3 + $0xf8] sm:$0xff]
          %v1588 = vlog2.pop %v1556
          %v1589 = vmul.f32 %v1588, 0.6931472
          %v1590 = vlog2.pop %v1557
          %v1591 = vmul.f32 %v1590, 0.6931472
          %v1592 = vlog2.pop %v1558
          %v1593 = vmul.f32 %v1592, 0.6931472
          %v1594 = vlog2.pop %v1559
          %v1595 = vmul.f32 %v1594, 0.6931472
          %v1596 = vlog2.pop %v1560
          %v1597 = vmul.f32 %v1596, 0.6931472
          %v1598 = vlog2.pop %v1561
          %v1599 = vmul.f32 %v1598, 0.6931472
          %v1600 = vlog2.pop %v1562
          %v1601 = vmul.f32 %v1600, 0.6931472
          %v1602 = vlog2.pop %v1563
          %v1603 = vmul.f32 %v1602, 0.6931472
          %v1604 = vlog2.pop %v1564
          %v1605 = vmul.f32 %v1604, 0.6931472
          %v1606 = vlog2.pop %v1565
          %v1607 = vmul.f32 %v1606, 0.6931472
          %v1608 = vlog2.pop %v1566
          %v1609 = vmul.f32 %v1608, 0.6931472
          %v1610 = vlog2.pop %v1567
          %v1611 = vmul.f32 %v1610, 0.6931472
          %v1612 = vlog2.pop %v1568
          %v1613 = vmul.f32 %v1612, 0.6931472
          %v1614 = vlog2.pop %v1569
          %v1615 = vmul.f32 %v1614, 0.6931472
          %v1616 = vlog2.pop %v1570
          %v1617 = vmul.f32 %v1616, 0.6931472
          %v1618 = vlog2.pop %v1571
          %v1619 = vmul.f32 %v1618, 0.6931472
          %v1620 = vlog2.pop %v1572
          %v1621 = vmul.f32 %v1620, 0.6931472
          %v1622 = vlog2.pop %v1573
          %v1623 = vmul.f32 %v1622, 0.6931472
          %v1624 = vlog2.pop %v1574
          %v1625 = vmul.f32 %v1624, 0.6931472
          %v1626 = vlog2.pop %v1575
          %v1627 = vmul.f32 %v1626, 0.6931472
          %v1628 = vlog2.pop %v1576
          %v1629 = vmul.f32 %v1628, 0.6931472
          %v1630 = vlog2.pop %v1577
          %v1631 = vmul.f32 %v1630, 0.6931472
          %v1632 = vlog2.pop %v1578
          %v1633 = vmul.f32 %v1632, 0.6931472
          %v1634 = vlog2.pop %v1579
          %v1635 = vmul.f32 %v1634, 0.6931472
          %v1636 = vlog2.pop %v1580
          %v1637 = vmul.f32 %v1636, 0.6931472
          %v1638 = vlog2.pop %v1581
          %v1639 = vmul.f32 %v1638, 0.6931472
          %v1640 = vlog2.pop %v1582
          %v1641 = vmul.f32 %v1640, 0.6931472
          %v1642 = vlog2.pop %v1583
          %v1643 = vmul.f32 %v1642, 0.6931472
          %v1644 = vlog2.pop %v1584
          %v1645 = vmul.f32 %v1644, 0.6931472
          %v1646 = vlog2.pop %v1585
          %v1647 = vmul.f32 %v1646, 0.6931472
          %v1648 = vlog2.pop %v1586
          %v1649 = vmul.f32 %v1648, 0.6931472
          %v1650 = vlog2.pop %v1587
          %v1651 = vmul.f32 %v1650, 0.6931472
          %v1652 = vadd.f32 %v1524, %v1589
          %v1653 = vadd.f32 %v1525, %v1591
          %v1654 = vadd.f32 %v1526, %v1593
          %v1655 = vadd.f32 %v1527, %v1595
          %v1656 = vadd.f32 %v1528, %v1597
          %v1657 = vadd.f32 %v1529, %v1599
          %v1658 = vadd.f32 %v1530, %v1601
          %v1659 = vadd.f32 %v1531, %v1603
          %v1660 = vadd.f32 %v1532, %v1605
          %v1661 = vadd.f32 %v1533, %v1607
          %v1662 = vadd.f32 %v1534, %v1609
          %v1663 = vadd.f32 %v1535, %v1611
          %v1664 = vadd.f32 %v1536, %v1613
          %v1665 = vadd.f32 %v1537, %v1615
          %v1666 = vadd.f32 %v1538, %v1617
          %v1667 = vadd.f32 %v1539, %v1619
          %v1668 = vadd.f32 %v1540, %v1621
          %v1669 = vadd.f32 %v1541, %v1623
          %v1670 = vadd.f32 %v1542, %v1625
          %v1671 = vadd.f32 %v1543, %v1627
          %v1672 = vadd.f32 %v1544, %v1629
          %v1673 = vadd.f32 %v1545, %v1631
          %v1674 = vadd.f32 %v1546, %v1633
          %v1675 = vadd.f32 %v1547, %v1635
          %v1676 = vadd.f32 %v1548, %v1637
          %v1677 = vadd.f32 %v1549, %v1639
          %v1678 = vadd.f32 %v1550, %v1641
          %v1679 = vadd.f32 %v1551, %v1643
          %v1680 = vadd.f32 %v1552, %v1645
          %v1681 = vadd.f32 %v1553, %v1647
          %v1682 = vadd.f32 %v1554, %v1649
          %v1683 = vadd.f32 %v1555, %v1651
          %1684 = vst.msk [vmem:[%s263] sm:$0xff] %vm1455, %v1652
          %1685 = vst.msk [vmem:[%s263 + $0x8] sm:$0xff] %vm1455, %v1653
          %1686 = vst.msk [vmem:[%s263 + $0x10] sm:$0xff] %vm1455, %v1654
          %1687 = vst.msk [vmem:[%s263 + $0x18] sm:$0xff] %vm1455, %v1655
          %1688 = vst.msk [vmem:[%s263 + $0x20] sm:$0xff] %vm1455, %v1656
          %1689 = vst.msk [vmem:[%s263 + $0x28] sm:$0xff] %vm1455, %v1657
          %1690 = vst.msk [vmem:[%s263 + $0x30] sm:$0xff] %vm1455, %v1658
          %1691 = vst.msk [vmem:[%s263 + $0x38] sm:$0xff] %vm1455, %v1659
          %1692 = vst.msk [vmem:[%s263 + $0x40] sm:$0xff] %vm1455, %v1660
          %1693 = vst.msk [vmem:[%s263 + $0x48] sm:$0xff] %vm1455, %v1661
          %1694 = vst.msk [vmem:[%s263 + $0x50] sm:$0xff] %vm1455, %v1662
          %1695 = vst.msk [vmem:[%s263 + $0x58] sm:$0xff] %vm1455, %v1663
          %1696 = vst.msk [vmem:[%s263 + $0x60] sm:$0xff] %vm1455, %v1664
          %1697 = vst.msk [vmem:[%s263 + $0x68] sm:$0xff] %vm1455, %v1665
          %1698 = vst.msk [vmem:[%s263 + $0x70] sm:$0xff] %vm1455, %v1666
          %1699 = vst.msk [vmem:[%s263 + $0x78] sm:$0xff] %vm1455, %v1667
          %1700 = vst.msk [vmem:[%s263 + $0x80] sm:$0xff] %vm1455, %v1668
          %1701 = vst.msk [vmem:[%s263 + $0x88] sm:$0xff] %vm1455, %v1669
          %1702 = vst.msk [vmem:[%s263 + $0x90] sm:$0xff] %vm1455, %v1670
          %1703 = vst.msk [vmem:[%s263 + $0x98] sm:$0xff] %vm1455, %v1671
          %1704 = vst.msk [vmem:[%s263 + $0xa0] sm:$0xff] %vm1455, %v1672
          %1705 = vst.msk [vmem:[%s263 + $0xa8] sm:$0xff] %vm1455, %v1673
          %1706 = vst.msk [vmem:[%s263 + $0xb0] sm:$0xff] %vm1455, %v1674
          %1707 = vst.msk [vmem:[%s263 + $0xb8] sm:$0xff] %vm1455, %v1675
          %1708 = vst.msk [vmem:[%s263 + $0xc0] sm:$0xff] %vm1455, %v1676
          %1709 = vst.msk [vmem:[%s263 + $0xc8] sm:$0xff] %vm1455, %v1677
          %1710 = vst.msk [vmem:[%s263 + $0xd0] sm:$0xff] %vm1455, %v1678
          %1711 = vst.msk [vmem:[%s263 + $0xd8] sm:$0xff] %vm1455, %v1679
          %1712 = vst.msk [vmem:[%s263 + $0xe0] sm:$0xff] %vm1455, %v1680
          %1713 = vst.msk [vmem:[%s263 + $0xe8] sm:$0xff] %vm1455, %v1681
          %1714 = vst.msk [vmem:[%s263 + $0xf0] sm:$0xff] %vm1455, %v1682
          %1715 = vst.msk [vmem:[%s263 + $0xf8] sm:$0xff] %vm1455, %v1683
        $region48: #{tpu_custom_call.1} parent=31 // pred_fallthru
          _
        %s1716 = smul.u32 32, %s24
        %p1717 = scmp.lt.s32.totalorder %s1716, 63
        %s1718 = scalar_select %p1717, %s1716, 63
        %s1719 = smul.addr %s1718, 8
        %s1720 = scalar_lea.vmem %s3, %s1719
        // Predicated region
        $region49: #{tpu_custom_call.1} parent=31 // pred_check
          %p1721 = pneg %p128
        $region50: #{tpu_custom_call.1} parent=31 // pred_check_branch
          %1723 = sbr.rel (%p1721) target = $region52
        $region51: #{tpu_custom_call.1} parent=31 // pred_region
          %s1724 = smul.u32 32, %s24
        $region52: #{tpu_custom_call.1} parent=31 // pred_fallthru
          _
      $region32: #{tpu_custom_call.1} parent=5 // pred_fallthru
        _
      %p1725 = scmp.le.s32.totalorder 2, %s15
      // Predicated region
      $region53: #{tpu_custom_call.1} parent=5 // pred_check
        %p1726 = pneg %p1725
      $region54: #{tpu_custom_call.1} parent=5 // pred_check_branch
        %1728 = sbr.rel (%p1726) target = $region56
      $region55: #{tpu_custom_call.1} parent=5 // pred_region
        %s1729 = ssub.s32 %s15, 2
        // Predicated region
        $region57: #{tpu_custom_call.1} parent=55 // pred_check
          %p1730 = pneg %p134
        $region58: #{tpu_custom_call.1} parent=55 // pred_check_branch
          %1732 = sbr.rel (%p1730) target = $region60
        $region59: #{tpu_custom_call.1} parent=55 // pred_region
          %s1733 = smul.u32 32, %s26
          %p1734 = scmp.lt.s32.totalorder %s1733, 63
          %s1735 = scalar_select %p1734, %s1733, 63
          %s1736 = smul.addr %s1735, 8
          %s1737 = scalar_lea.vmem %s3, %s1736
        $region60: #{tpu_custom_call.1} parent=55 // pred_fallthru
          _
      $region56: #{tpu_custom_call.1} parent=5 // pred_fallthru
        _
    $region6: #{tpu_custom_call.1} parent=1 // loop_footer
      %s19 = sadd.s32 1, %s15
    $region7: #{tpu_custom_call.1} parent=1 // loop_footer_branch
      %14 = sbr.rel target = $region3
    $region8: #{tpu_custom_call.1} parent=1 // loop_exit
      _
    %1738 = vsyncpa [#allocation5], 1
    %s1739 = scalar_lea.sflag [#allocation5], 1
    %1740 = vsyncpa %s1739, 1
    %1741 = vsyncpa [#allocation7], 1
    %s1742 = scalar_lea.sflag [#allocation7], 1
    %1743 = vsyncpa %s1742, 1

</llo_original>
